<compile_context>
chip_gen: v7x
topology: tpu7x:2x2x1
jax: 0.10.0
libtpu: 0.0.40
codegen_flags: <defaults>
</compile_context>

<pallas_src>
import math
import functools

import jax
import jax.numpy as jnp
from jax import lax
from jax.experimental import pallas as pl
from jax.experimental.pallas import tpu as pltpu


PARAMS_PER_LAYER = 4  # wih_packed, whh_packed, b_gi_packed, b_gh_packed


def _round_up(x, m):
    return ((x + m - 1) // m) * m


# ------------------------------ Pallas kernel ------------------------------- #

def make_gru_fc_kernel(num_layers, hidden_size, seq_len, batch_p, gate_p):
    """Layer-major multi-layer GRU + final Linear, fully VMEM-resident.

    Ref order:
      inputs : x2d (T*Bp, D),
               per layer: wih_p (in_l, Gp), whh_p (H, Gp),
                          b_gi (1, Gp)  [r/z lanes: b_ih+b_hh folded, n lanes: b_in],
                          b_gh (1, Gp)  [r/z lanes: 0,               n lanes: b_hn]
               fc_w (H, Cp), fc_b (1, Cp)
      output : out (Bp, Cp)
      scratch: hs (T*Bp, H), gi (T*Bp, Gp)
    """
    H, T, Bp, Gp = hidden_size, seq_len, batch_p, gate_p
    P = PARAMS_PER_LAYER

    def kernel(*refs):
        x_ref = refs[0]
        fc_w_ref = refs[1 + P * num_layers]
        fc_b_ref = refs[2 + P * num_layers]
        out_ref = refs[3 + P * num_layers]
        hs_ref = refs[4 + P * num_layers]
        gi_ref = refs[5 + P * num_layers]

        h_last = None
        for l in range(num_layers):
            base = 1 + l * P
            wih_ref, whh_ref, b_gi_ref, b_gh_ref = refs[base:base + P]

            # ---- Batched input projection for ALL timesteps (off the serial path):
            #      one packed MXU dot per layer, biases folded in, parked in VMEM.
            if l == 0:
                inp2d = x_ref[...]                      # (T*Bp, D)
            else:
                inp2d = hs_ref[...]                     # (T*Bp, H) previous layer outputs
            gi_ref[...] = (jnp.dot(inp2d, wih_ref[...],
                                   preferred_element_type=jnp.float32)
                           + b_gi_ref[...])             # (T*Bp, Gp), lane-dense

            # Recurrent weights vreg-resident for this layer (4 vregs at H=32, Gp=128).
            whh = whh_ref[...]
            # Hoisted broadcast (JAX does not CSE broadcast_in_dim inside the loop).
            b_gh = jnp.broadcast_to(b_gh_ref[...], (Bp, Gp))

            h = jnp.zeros((Bp, H), jnp.float32)
            write_hs = l < num_layers - 1
            for t in range(T):  # fully unrolled: static trip count, static indices
                # Single packed recurrent MXU dot per step (r|z|n in one 128-lane slab).
                gh = jnp.dot(h, whh, preferred_element_type=jnp.float32) + b_gh
                gi_t = gi_ref[pl.ds(t * Bp, Bp), :]     # one vreg at Bp=8, Gp=128
                # r,z: one EUP tanh over the packed 2H lanes, sigmoid via identity.
                s_rz = gi_t[:, :2 * H] + gh[:, :2 * H]
                rz = 0.5 * (jnp.tanh(0.5 * s_rz) + 1.0)
                r = rz[:, :H]
                z = rz[:, H:2 * H]
                # n depends on r -> second (unavoidable) EUP issue.
                n = jnp.tanh(gi_t[:, 2 * H:3 * H] + r * gh[:, 2 * H:3 * H])
                h = n + z * (h - n)                     # == (1 - z) * n + z * h
                if write_hs:
                    hs_ref[pl.ds(t * Bp, Bp), :] = h    # feeds next layer's projection
            h_last = h

        # Final Linear on the last timestep of the last layer (lane-dense padded C).
        out = jnp.dot(h_last, fc_w_ref[...], preferred_element_type=jnp.float32)
        out_ref[...] = (out + fc_b_ref[...]).astype(out_ref.dtype)

    return kernel


# ----------------------- One-time parameter packing --------------------------- #

def prepare_params(params):
    """Hoists all weight reformatting off the per-call path. Returns (flat_arrays, meta)."""
    layers = params["layers"]
    H = layers[0]["w_hh"].shape[1]
    C = params["fc_w"].shape[0]
    Gp = _round_up(3 * H, 128)              # packed gate width, lane-dense
    Cp = _round_up(max(C, 128), 128)        # lane-dense FC output slab

    flat = []
    for lp in layers:
        w_ih = lp["w_ih"].astype(jnp.float32)      # (3H, in), gate order [r | z | n]
        w_hh = lp["w_hh"].astype(jnp.float32)      # (3H, H)
        b_ih = lp["b_ih"].astype(jnp.float32)      # (3H,)
        b_hh = lp["b_hh"].astype(jnp.float32)      # (3H,)
        in_size = w_ih.shape[1]

        wih_p = jnp.zeros((in_size, Gp), jnp.float32).at[:, :3 * H].set(w_ih.T)
        whh_p = jnp.zeros((H, Gp), jnp.float32).at[:, :3 * H].set(w_hh.T)

        b_gi = jnp.zeros((1, Gp), jnp.float32)
        b_gi = b_gi.at[0, :H].set(b_ih[:H] + b_hh[:H])                  # r (folded)
        b_gi = b_gi.at[0, H:2 * H].set(b_ih[H:2 * H] + b_hh[H:2 * H])   # z (folded)
        b_gi = b_gi.at[0, 2 * H:3 * H].set(b_ih[2 * H:3 * H])           # b_in
        b_gh = jnp.zeros((1, Gp), jnp.float32).at[0, 2 * H:3 * H].set(
            b_hh[2 * H:3 * H])                                          # b_hn only

        flat += [wih_p, whh_p, b_gi, b_gh]

    fc_w_p = jnp.zeros((H, Cp), jnp.float32).at[:, :C].set(
        params["fc_w"].astype(jnp.float32).T)
    fc_b_p = jnp.zeros((1, Cp), jnp.float32).at[0, :C].set(
        params["fc_b"].astype(jnp.float32))
    flat += [fc_w_p, fc_b_p]

    meta = {"num_layers": len(layers), "H": H, "C": C, "Gp": Gp, "Cp": Cp}
    return flat, meta


# --------------------------------- Wrapper ----------------------------------- #

def gru_model_forward(x, flat, meta):
    """x: (B, T, D) float32, batch_first.  flat/meta from prepare_params.  Returns (B, C)."""
    B, T, D = x.shape
    H, C = meta["H"], meta["C"]
    Gp, Cp = meta["Gp"], meta["Cp"]
    num_layers = meta["num_layers"]

    Bp = _round_up(B, 8)                   # sublane-align the batch

    # time-major, batch-padded, flattened to (T*Bp, D) for the batched input projections
    x_tm = jnp.transpose(x, (1, 0, 2)).astype(jnp.float32)            # (T, B, D)
    x_p = jnp.zeros((T, Bp, D), jnp.float32).at[:, :B, :].set(x_tm)
    x2d = x_p.reshape(T * Bp, D)

    kernel = make_gru_fc_kernel(num_layers, H, T, Bp, Gp)
    vmem = pl.BlockSpec(memory_space=pltpu.MemorySpace.VMEM)
    n_inputs = 1 + len(flat)

    # Whole problem fits in VMEM at these shapes (a few tens of KiB).
    # TODO(synk): for large T*B (or v7x's 64 MiB VMEM) switch x/hs/gi to a time-chunked grid
    # with BlockSpec index_maps, and add a batch-parallel grid axis
    # (dimension_semantics=("parallel",)) so both v7x TensorCores are used.
    out_p = pl.pallas_call(
        kernel,
        out_shape=jax.ShapeDtypeStruct((Bp, Cp), jnp.float32),
        in_specs=[vmem] * n_inputs,
        out_specs=vmem,
        scratch_shapes=[
            pltpu.VMEM((T * Bp, H), jnp.float32),    # hidden states handed to next layer
            pltpu.VMEM((T * Bp, Gp), jnp.float32),   # packed gi (r|z|n) for all timesteps
        ],
    )(x2d, *flat)

    return out_p[:B, :C]


# ----------------------------- Deterministic init ----------------------------- #

def init_params(key, input_size, hidden_size, num_layers, num_classes):
    k = 1.0 / math.sqrt(hidden_size)
    layers = []
    for l in range(num_layers):
        in_size = input_size if l == 0 else hidden_size
        key, k1, k2, k3, k4 = jax.random.split(key, 5)
        layers.append({
            "w_ih": jax.random.uniform(k1, (3 * hidden_size, in_size), jnp.float32, -k, k),
            "w_hh": jax.random.uniform(k2, (3 * hidden_size, hidden_size), jnp.float32, -k, k),
            "b_ih": jax.random.uniform(k3, (3 * hidden_size,), jnp.float32, -k, k),
            "b_hh": jax.random.uniform(k4, (3 * hidden_size,), jnp.float32, -k, k),
        })
    key, k1, k2 = jax.random.split(key, 3)
    return {
        "layers": layers,
        "fc_w": jax.random.uniform(k1, (num_classes, hidden_size), jnp.float32, -k, k),
        "fc_b": jax.random.uniform(k2, (num_classes,), jnp.float32, -k, k),
    }


# -------------------------------- Pure-JAX ref --------------------------------- #

def gru_model_reference(x, params):
    B, T, D = x.shape
    layers = params["layers"]
    H = layers[0]["w_hh"].shape[1]
    seq = x.astype(jnp.float32)
    for lp in layers:
        w_ih_t = lp["w_ih"].T
        w_hh_t = lp["w_hh"].T
        b_ih = lp["b_ih"][None, :]
        b_hh = lp["b_hh"][None, :]

        def cell(h, x_t):
            gi = x_t @ w_ih_t + b_ih
            gh = h @ w_hh_t + b_hh
            r = jax.nn.sigmoid(gi[:, :H] + gh[:, :H])
            z = jax.nn.sigmoid(gi[:, H:2 * H] + gh[:, H:2 * H])
            n = jnp.tanh(gi[:, 2 * H:] + r * gh[:, 2 * H:])
            h_new = (1.0 - z) * n + z * h
            return h_new, h_new

        h0 = jnp.zeros((B, H), jnp.float32)
        _, outs = lax.scan(cell, h0, jnp.transpose(seq, (1, 0, 2)))
        seq = jnp.transpose(outs, (1, 0, 2))
    return seq[:, -1, :] @ params["fc_w"].T + params["fc_b"][None, :]


# ----------------------------------- Main --------------------------------------- #

if __name__ == "__main__":
    batch, seq_len, input_size = 2, 8, 16
    hidden_size, num_layers, num_classes = 32, 2, 4

    key = jax.random.PRNGKey(0)
    key, kx, kp = jax.random.split(key, 3)
    x = jax.random.normal(kx, (batch, seq_len, input_size), jnp.float32)
    params = init_params(kp, input_size, hidden_size, num_layers, num_classes)

    # One-time parameter packing, hoisted off the per-call path.
    flat, meta = prepare_params(params)
    flat = jax.block_until_ready(flat)

    fwd = jax.jit(functools.partial(gru_model_forward, meta=meta))
    out = jax.block_until_ready(fwd(x, flat))

    ref = jax.block_until_ready(gru_model_reference(x, params))
    assert out.shape == (batch, num_classes)
    assert jnp.allclose(out, ref, rtol=1e-3, atol=1e-3), (out, ref)

    print("KERNEL_OK")
</pallas_src>

<mosaic_0001>
module attributes {stable_mosaic.version = 11 : i64} {
  func.func @kernel(%arg0: memref<64x16xf32, #tpu.memory_space<vmem>>, %arg1: memref<16x128xf32, #tpu.memory_space<vmem>>, %arg2: memref<32x128xf32, #tpu.memory_space<vmem>>, %arg3: memref<1x128xf32, #tpu.memory_space<vmem>>, %arg4: memref<1x128xf32, #tpu.memory_space<vmem>>, %arg5: memref<32x128xf32, #tpu.memory_space<vmem>>, %arg6: memref<32x128xf32, #tpu.memory_space<vmem>>, %arg7: memref<1x128xf32, #tpu.memory_space<vmem>>, %arg8: memref<1x128xf32, #tpu.memory_space<vmem>>, %arg9: memref<32x128xf32, #tpu.memory_space<vmem>>, %arg10: memref<1x128xf32, #tpu.memory_space<vmem>>, %arg11: memref<8x128xf32, #tpu.memory_space<vmem>>, %arg12: memref<64x32xf32, #tpu.memory_space<vmem>>, %arg13: memref<64x128xf32, #tpu.memory_space<vmem>>) attributes {dimension_semantics = [], scalar_prefetch = 0 : i64, scratch_operands = 2 : i64, tpu.core_type = #tpu.core_type<tc>} {
    %c0 = arith.constant 0 : index
    %c0_0 = arith.constant 0 : index
    %0 = vector.load %arg0[%c0, %c0_0] : memref<64x16xf32, #tpu.memory_space<vmem>>, vector<64x16xf32>
    %c0_1 = arith.constant 0 : index
    %c0_2 = arith.constant 0 : index
    %1 = vector.load %arg1[%c0_1, %c0_2] : memref<16x128xf32, #tpu.memory_space<vmem>>, vector<16x128xf32>
    %cst = arith.constant dense<0.000000e+00> : vector<64x128xf32>
    %2 = tpu.matmul %0, %1, %cst {dimension_numbers = #tpu.dot_dimension_numbers<[1], [0], [0], [1], [0, 0, 1, 1], [], []>} : vector<64x16xf32>, vector<16x128xf32>, vector<64x128xf32> -> vector<64x128xf32>
    %c0_3 = arith.constant 0 : index
    %c0_4 = arith.constant 0 : index
    %3 = vector.load %arg3[%c0_3, %c0_4] : memref<1x128xf32, #tpu.memory_space<vmem>>, vector<1x128xf32>
    %4 = vector.broadcast %3 : vector<1x128xf32> to vector<64x128xf32>
    %5 = arith.addf %2, %4 : vector<64x128xf32>
    %c0_5 = arith.constant 0 : index
    %c0_6 = arith.constant 0 : index
    %6 = vector.load %arg13[%c0_5, %c0_6] : memref<64x128xf32, #tpu.memory_space<vmem>>, vector<64x128xf32>
    tpu.vector_store %arg13[%c0_5, %c0_6], %5 {strides = array<i32>} : memref<64x128xf32, #tpu.memory_space<vmem>>, vector<64x128xf32>,
    %c0_7 = arith.constant 0 : index
    %c0_8 = arith.constant 0 : index
    %7 = vector.load %arg2[%c0_7, %c0_8] : memref<32x128xf32, #tpu.memory_space<vmem>>, vector<32x128xf32>
    %c0_9 = arith.constant 0 : index
    %c0_10 = arith.constant 0 : index
    %8 = vector.load %arg4[%c0_9, %c0_10] : memref<1x128xf32, #tpu.memory_space<vmem>>, vector<1x128xf32>
    %9 = vector.shape_cast %8 : vector<1x128xf32> to vector<1x128xf32>
    %10 = vector.broadcast %9 : vector<1x128xf32> to vector<8x128xf32>
    %cst_11 = arith.constant 0.000000e+00 : f32
    %11 = vector.broadcast %cst_11 : f32 to vector<8x32xf32>
    %cst_12 = arith.constant dense<0.000000e+00> : vector<8x128xf32>
    %12 = tpu.matmul %11, %7, %cst_12 {dimension_numbers = #tpu.dot_dimension_numbers<[1], [0], [0], [1], [0, 0, 1, 1], [], []>} : vector<8x32xf32>, vector<32x128xf32>, vector<8x128xf32> -> vector<8x128xf32>
    %13 = arith.addf %12, %10 : vector<8x128xf32>
    %c0_13 = arith.constant 0 : index
    %c0_14 = arith.constant 0 : index
    %14 = vector.load %arg13[%c0_13, %c0_14] : memref<64x128xf32, #tpu.memory_space<vmem>>, vector<8x128xf32>
    %15 = vector.extract_strided_slice %14 {offsets = [0, 0], sizes = [8, 64], strides = [1, 1]} : vector<8x128xf32> to vector<8x64xf32>
    %16 = vector.extract_strided_slice %13 {offsets = [0, 0], sizes = [8, 64], strides = [1, 1]} : vector<8x128xf32> to vector<8x64xf32>
    %17 = arith.addf %15, %16 : vector<8x64xf32>
    %cst_15 = arith.constant 5.000000e-01 : f32
    %18 = vector.broadcast %cst_15 : f32 to vector<8x64xf32>
    %19 = arith.mulf %18, %17 : vector<8x64xf32>
    %20 = math.tanh %19 : vector<8x64xf32>
    %cst_16 = arith.constant 1.000000e+00 : f32
    %21 = vector.broadcast %cst_16 : f32 to vector<8x64xf32>
    %22 = arith.addf %20, %21 : vector<8x64xf32>
    %cst_17 = arith.constant 5.000000e-01 : f32
    %23 = vector.broadcast %cst_17 : f32 to vector<8x64xf32>
    %24 = arith.mulf %23, %22 : vector<8x64xf32>
    %25 = vector.extract_strided_slice %24 {offsets = [0, 0], sizes = [8, 32], strides = [1, 1]} : vector<8x64xf32> to vector<8x32xf32>
    %26 = vector.extract_strided_slice %24 {offsets = [0, 32], sizes = [8, 32], strides = [1, 1]} : vector<8x64xf32> to vector<8x32xf32>
    %27 = vector.extract_strided_slice %14 {offsets = [0, 64], sizes = [8, 32], strides = [1, 1]} : vector<8x128xf32> to vector<8x32xf32>
    %28 = vector.extract_strided_slice %13 {offsets = [0, 64], sizes = [8, 32], strides = [1, 1]} : vector<8x128xf32> to vector<8x32xf32>
    %29 = arith.mulf %25, %28 : vector<8x32xf32>
    %30 = arith.addf %27, %29 : vector<8x32xf32>
    %31 = math.tanh %30 : vector<8x32xf32>
    %32 = arith.subf %11, %31 : vector<8x32xf32>
    %33 = arith.mulf %26, %32 : vector<8x32xf32>
    %34 = arith.addf %31, %33 : vector<8x32xf32>
    %c0_18 = arith.constant 0 : index
    %c0_19 = arith.constant 0 : index
    %35 = vector.load %arg12[%c0_18, %c0_19] : memref<64x32xf32, #tpu.memory_space<vmem>>, vector<8x32xf32>
    tpu.vector_store %arg12[%c0_18, %c0_19], %34 {strides = array<i32>} : memref<64x32xf32, #tpu.memory_space<vmem>>, vector<8x32xf32>,
    %cst_20 = arith.constant dense<0.000000e+00> : vector<8x128xf32>
    %36 = tpu.matmul %34, %7, %cst_20 {dimension_numbers = #tpu.dot_dimension_numbers<[1], [0], [0], [1], [0, 0, 1, 1], [], []>} : vector<8x32xf32>, vector<32x128xf32>, vector<8x128xf32> -> vector<8x128xf32>
    %37 = arith.addf %36, %10 : vector<8x128xf32>
    %c8 = arith.constant 8 : index
    %c0_21 = arith.constant 0 : index
    %38 = vector.load %arg13[%c8, %c0_21] : memref<64x128xf32, #tpu.memory_space<vmem>>, vector<8x128xf32>
    %39 = vector.extract_strided_slice %38 {offsets = [0, 0], sizes = [8, 64], strides = [1, 1]} : vector<8x128xf32> to vector<8x64xf32>
    %40 = vector.extract_strided_slice %37 {offsets = [0, 0], sizes = [8, 64], strides = [1, 1]} : vector<8x128xf32> to vector<8x64xf32>
    %41 = arith.addf %39, %40 : vector<8x64xf32>
    %cst_22 = arith.constant 5.000000e-01 : f32
    %42 = vector.broadcast %cst_22 : f32 to vector<8x64xf32>
    %43 = arith.mulf %42, %41 : vector<8x64xf32>
    %44 = math.tanh %43 : vector<8x64xf32>
    %cst_23 = arith.constant 1.000000e+00 : f32
    %45 = vector.broadcast %cst_23 : f32 to vector<8x64xf32>
    %46 = arith.addf %44, %45 : vector<8x64xf32>
    %cst_24 = arith.constant 5.000000e-01 : f32
    %47 = vector.broadcast %cst_24 : f32 to vector<8x64xf32>
    %48 = arith.mulf %47, %46 : vector<8x64xf32>
    %49 = vector.extract_strided_slice %48 {offsets = [0, 0], sizes = [8, 32], strides = [1, 1]} : vector<8x64xf32> to vector<8x32xf32>
    %50 = vector.extract_strided_slice %48 {offsets = [0, 32], sizes = [8, 32], strides = [1, 1]} : vector<8x64xf32> to vector<8x32xf32>
    %51 = vector.extract_strided_slice %38 {offsets = [0, 64], sizes = [8, 32], strides = [1, 1]} : vector<8x128xf32> to vector<8x32xf32>
    %52 = vector.extract_strided_slice %37 {offsets = [0, 64], sizes = [8, 32], strides = [1, 1]} : vector<8x128xf32> to vector<8x32xf32>
    %53 = arith.mulf %49, %52 : vector<8x32xf32>
    %54 = arith.addf %51, %53 : vector<8x32xf32>
    %55 = math.tanh %54 : vector<8x32xf32>
    %56 = arith.subf %34, %55 : vector<8x32xf32>
    %57 = arith.mulf %50, %56 : vector<8x32xf32>
    %58 = arith.addf %55, %57 : vector<8x32xf32>
    %c8_25 = arith.constant 8 : index
    %c0_26 = arith.constant 0 : index
    %59 = vector.load %arg12[%c8_25, %c0_26] : memref<64x32xf32, #tpu.memory_space<vmem>>, vector<8x32xf32>
    tpu.vector_store %arg12[%c8_25, %c0_26], %58 {strides = array<i32>} : memref<64x32xf32, #tpu.memory_space<vmem>>, vector<8x32xf32>,
    %cst_27 = arith.constant dense<0.000000e+00> : vector<8x128xf32>
    %60 = tpu.matmul %58, %7, %cst_27 {dimension_numbers = #tpu.dot_dimension_numbers<[1], [0], [0], [1], [0, 0, 1, 1], [], []>} : vector<8x32xf32>, vector<32x128xf32>, vector<8x128xf32> -> vector<8x128xf32>
    %61 = arith.addf %60, %10 : vector<8x128xf32>
    %c16 = arith.constant 16 : index
    %c0_28 = arith.constant 0 : index
    %62 = vector.load %arg13[%c16, %c0_28] : memref<64x128xf32, #tpu.memory_space<vmem>>, vector<8x128xf32>
    %63 = vector.extract_strided_slice %62 {offsets = [0, 0], sizes = [8, 64], strides = [1, 1]} : vector<8x128xf32> to vector<8x64xf32>
    %64 = vector.extract_strided_slice %61 {offsets = [0, 0], sizes = [8, 64], strides = [1, 1]} : vector<8x128xf32> to vector<8x64xf32>
    %65 = arith.addf %63, %64 : vector<8x64xf32>
    %cst_29 = arith.constant 5.000000e-01 : f32
    %66 = vector.broadcast %cst_29 : f32 to vector<8x64xf32>
    %67 = arith.mulf %66, %65 : vector<8x64xf32>
    %68 = math.tanh %67 : vector<8x64xf32>
    %cst_30 = arith.constant 1.000000e+00 : f32
    %69 = vector.broadcast %cst_30 : f32 to vector<8x64xf32>
    %70 = arith.addf %68, %69 : vector<8x64xf32>
    %cst_31 = arith.constant 5.000000e-01 : f32
    %71 = vector.broadcast %cst_31 : f32 to vector<8x64xf32>
    %72 = arith.mulf %71, %70 : vector<8x64xf32>
    %73 = vector.extract_strided_slice %72 {offsets = [0, 0], sizes = [8, 32], strides = [1, 1]} : vector<8x64xf32> to vector<8x32xf32>
    %74 = vector.extract_strided_slice %72 {offsets = [0, 32], sizes = [8, 32], strides = [1, 1]} : vector<8x64xf32> to vector<8x32xf32>
    %75 = vector.extract_strided_slice %62 {offsets = [0, 64], sizes = [8, 32], strides = [1, 1]} : vector<8x128xf32> to vector<8x32xf32>
    %76 = vector.extract_strided_slice %61 {offsets = [0, 64], sizes = [8, 32], strides = [1, 1]} : vector<8x128xf32> to vector<8x32xf32>
    %77 = arith.mulf %73, %76 : vector<8x32xf32>
    %78 = arith.addf %75, %77 : vector<8x32xf32>
    %79 = math.tanh %78 : vector<8x32xf32>
    %80 = arith.subf %58, %79 : vector<8x32xf32>
    %81 = arith.mulf %74, %80 : vector<8x32xf32>
    %82 = arith.addf %79, %81 : vector<8x32xf32>
    %c16_32 = arith.constant 16 : index
    %c0_33 = arith.constant 0 : index
    %83 = vector.load %arg12[%c16_32, %c0_33] : memref<64x32xf32, #tpu.memory_space<vmem>>, vector<8x32xf32>
    tpu.vector_store %arg12[%c16_32, %c0_33], %82 {strides = array<i32>} : memref<64x32xf32, #tpu.memory_space<vmem>>, vector<8x32xf32>,
    %cst_34 = arith.constant dense<0.000000e+00> : vector<8x128xf32>
    %84 = tpu.matmul %82, %7, %cst_34 {dimension_numbers = #tpu.dot_dimension_numbers<[1], [0], [0], [1], [0, 0, 1, 1], [], []>} : vector<8x32xf32>, vector<32x128xf32>, vector<8x128xf32> -> vector<8x128xf32>
    %85 = arith.addf %84, %10 : vector<8x128xf32>
    %c24 = arith.constant 24 : index
    %c0_35 = arith.constant 0 : index
    %86 = vector.load %arg13[%c24, %c0_35] : memref<64x128xf32, #tpu.memory_space<vmem>>, vector<8x128xf32>
    %87 = vector.extract_strided_slice %86 {offsets = [0, 0], sizes = [8, 64], strides = [1, 1]} : vector<8x128xf32> to vector<8x64xf32>
    %88 = vector.extract_strided_slice %85 {offsets = [0, 0], sizes = [8, 64], strides = [1, 1]} : vector<8x128xf32> to vector<8x64xf32>
    %89 = arith.addf %87, %88 : vector<8x64xf32>
    %cst_36 = arith.constant 5.000000e-01 : f32
    %90 = vector.broadcast %cst_36 : f32 to vector<8x64xf32>
    %91 = arith.mulf %90, %89 : vector<8x64xf32>
    %92 = math.tanh %91 : vector<8x64xf32>
    %cst_37 = arith.constant 1.000000e+00 : f32
    %93 = vector.broadcast %cst_37 : f32 to vector<8x64xf32>
    %94 = arith.addf %92, %93 : vector<8x64xf32>
    %cst_38 = arith.constant 5.000000e-01 : f32
    %95 = vector.broadcast %cst_38 : f32 to vector<8x64xf32>
    %96 = arith.mulf %95, %94 : vector<8x64xf32>
    %97 = vector.extract_strided_slice %96 {offsets = [0, 0], sizes = [8, 32], strides = [1, 1]} : vector<8x64xf32> to vector<8x32xf32>
    %98 = vector.extract_strided_slice %96 {offsets = [0, 32], sizes = [8, 32], strides = [1, 1]} : vector<8x64xf32> to vector<8x32xf32>
    %99 = vector.extract_strided_slice %86 {offsets = [0, 64], sizes = [8, 32], strides = [1, 1]} : vector<8x128xf32> to vector<8x32xf32>
    %100 = vector.extract_strided_slice %85 {offsets = [0, 64], sizes = [8, 32], strides = [1, 1]} : vector<8x128xf32> to vector<8x32xf32>
    %101 = arith.mulf %97, %100 : vector<8x32xf32>
    %102 = arith.addf %99, %101 : vector<8x32xf32>
    %103 = math.tanh %102 : vector<8x32xf32>
    %104 = arith.subf %82, %103 : vector<8x32xf32>
    %105 = arith.mulf %98, %104 : vector<8x32xf32>
    %106 = arith.addf %103, %105 : vector<8x32xf32>
    %c24_39 = arith.constant 24 : index
    %c0_40 = arith.constant 0 : index
    %107 = vector.load %arg12[%c24_39, %c0_40] : memref<64x32xf32, #tpu.memory_space<vmem>>, vector<8x32xf32>
    tpu.vector_store %arg12[%c24_39, %c0_40], %106 {strides = array<i32>} : memref<64x32xf32, #tpu.memory_space<vmem>>, vector<8x32xf32>,
    %cst_41 = arith.constant dense<0.000000e+00> : vector<8x128xf32>
    %108 = tpu.matmul %106, %7, %cst_41 {dimension_numbers = #tpu.dot_dimension_numbers<[1], [0], [0], [1], [0, 0, 1, 1], [], []>} : vector<8x32xf32>, vector<32x128xf32>, vector<8x128xf32> -> vector<8x128xf32>
    %109 = arith.addf %108, %10 : vector<8x128xf32>
    %c32 = arith.constant 32 : index
    %c0_42 = arith.constant 0 : index
    %110 = vector.load %arg13[%c32, %c0_42] : memref<64x128xf32, #tpu.memory_space<vmem>>, vector<8x128xf32>
    %111 = vector.extract_strided_slice %110 {offsets = [0, 0], sizes = [8, 64], strides = [1, 1]} : vector<8x128xf32> to vector<8x64xf32>
    %112 = vector.extract_strided_slice %109 {offsets = [0, 0], sizes = [8, 64], strides = [1, 1]} : vector<8x128xf32> to vector<8x64xf32>
    %113 = arith.addf %111, %112 : vector<8x64xf32>
    %cst_43 = arith.constant 5.000000e-01 : f32
    %114 = vector.broadcast %cst_43 : f32 to vector<8x64xf32>
    %115 = arith.mulf %114, %113 : vector<8x64xf32>
    %116 = math.tanh %115 : vector<8x64xf32>
    %cst_44 = arith.constant 1.000000e+00 : f32
    %117 = vector.broadcast %cst_44 : f32 to vector<8x64xf32>
    %118 = arith.addf %116, %117 : vector<8x64xf32>
    %cst_45 = arith.constant 5.000000e-01 : f32
    %119 = vector.broadcast %cst_45 : f32 to vector<8x64xf32>
    %120 = arith.mulf %119, %118 : vector<8x64xf32>
    %121 = vector.extract_strided_slice %120 {offsets = [0, 0], sizes = [8, 32], strides = [1, 1]} : vector<8x64xf32> to vector<8x32xf32>
    %122 = vector.extract_strided_slice %120 {offsets = [0, 32], sizes = [8, 32], strides = [1, 1]} : vector<8x64xf32> to vector<8x32xf32>
    %123 = vector.extract_strided_slice %110 {offsets = [0, 64], sizes = [8, 32], strides = [1, 1]} : vector<8x128xf32> to vector<8x32xf32>
    %124 = vector.extract_strided_slice %109 {offsets = [0, 64], sizes = [8, 32], strides = [1, 1]} : vector<8x128xf32> to vector<8x32xf32>
    %125 = arith.mulf %121, %124 : vector<8x32xf32>
    %126 = arith.addf %123, %125 : vector<8x32xf32>
    %127 = math.tanh %126 : vector<8x32xf32>
    %128 = arith.subf %106, %127 : vector<8x32xf32>
    %129 = arith.mulf %122, %128 : vector<8x32xf32>
    %130 = arith.addf %127, %129 : vector<8x32xf32>
    %c32_46 = arith.constant 32 : index
    %c0_47 = arith.constant 0 : index
    %131 = vector.load %arg12[%c32_46, %c0_47] : memref<64x32xf32, #tpu.memory_space<vmem>>, vector<8x32xf32>
    tpu.vector_store %arg12[%c32_46, %c0_47], %130 {strides = array<i32>} : memref<64x32xf32, #tpu.memory_space<vmem>>, vector<8x32xf32>,
    %cst_48 = arith.constant dense<0.000000e+00> : vector<8x128xf32>
    %132 = tpu.matmul %130, %7, %cst_48 {dimension_numbers = #tpu.dot_dimension_numbers<[1], [0], [0], [1], [0, 0, 1, 1], [], []>} : vector<8x32xf32>, vector<32x128xf32>, vector<8x128xf32> -> vector<8x128xf32>
    %133 = arith.addf %132, %10 : vector<8x128xf32>
    %c40 = arith.constant 40 : index
    %c0_49 = arith.constant 0 : index
    %134 = vector.load %arg13[%c40, %c0_49] : memref<64x128xf32, #tpu.memory_space<vmem>>, vector<8x128xf32>
    %135 = vector.extract_strided_slice %134 {offsets = [0, 0], sizes = [8, 64], strides = [1, 1]} : vector<8x128xf32> to vector<8x64xf32>
    %136 = vector.extract_strided_slice %133 {offsets = [0, 0], sizes = [8, 64], strides = [1, 1]} : vector<8x128xf32> to vector<8x64xf32>
    %137 = arith.addf %135, %136 : vector<8x64xf32>
    %cst_50 = arith.constant 5.000000e-01 : f32
    %138 = vector.broadcast %cst_50 : f32 to vector<8x64xf32>
    %139 = arith.mulf %138, %137 : vector<8x64xf32>
    %140 = math.tanh %139 : vector<8x64xf32>
    %cst_51 = arith.constant 1.000000e+00 : f32
    %141 = vector.broadcast %cst_51 : f32 to vector<8x64xf32>
    %142 = arith.addf %140, %141 : vector<8x64xf32>
    %cst_52 = arith.constant 5.000000e-01 : f32
    %143 = vector.broadcast %cst_52 : f32 to vector<8x64xf32>
    %144 = arith.mulf %143, %142 : vector<8x64xf32>
    %145 = vector.extract_strided_slice %144 {offsets = [0, 0], sizes = [8, 32], strides = [1, 1]} : vector<8x64xf32> to vector<8x32xf32>
    %146 = vector.extract_strided_slice %144 {offsets = [0, 32], sizes = [8, 32], strides = [1, 1]} : vector<8x64xf32> to vector<8x32xf32>
    %147 = vector.extract_strided_slice %134 {offsets = [0, 64], sizes = [8, 32], strides = [1, 1]} : vector<8x128xf32> to vector<8x32xf32>
    %148 = vector.extract_strided_slice %133 {offsets = [0, 64], sizes = [8, 32], strides = [1, 1]} : vector<8x128xf32> to vector<8x32xf32>
    %149 = arith.mulf %145, %148 : vector<8x32xf32>
    %150 = arith.addf %147, %149 : vector<8x32xf32>
    %151 = math.tanh %150 : vector<8x32xf32>
    %152 = arith.subf %130, %151 : vector<8x32xf32>
    %153 = arith.mulf %146, %152 : vector<8x32xf32>
    %154 = arith.addf %151, %153 : vector<8x32xf32>
    %c40_53 = arith.constant 40 : index
    %c0_54 = arith.constant 0 : index
    %155 = vector.load %arg12[%c40_53, %c0_54] : memref<64x32xf32, #tpu.memory_space<vmem>>, vector<8x32xf32>
    tpu.vector_store %arg12[%c40_53, %c0_54], %154 {strides = array<i32>} : memref<64x32xf32, #tpu.memory_space<vmem>>, vector<8x32xf32>,
    %cst_55 = arith.constant dense<0.000000e+00> : vector<8x128xf32>
    %156 = tpu.matmul %154, %7, %cst_55 {dimension_numbers = #tpu.dot_dimension_numbers<[1], [0], [0], [1], [0, 0, 1, 1], [], []>} : vector<8x32xf32>, vector<32x128xf32>, vector<8x128xf32> -> vector<8x128xf32>
    %157 = arith.addf %156, %10 : vector<8x128xf32>
    %c48 = arith.constant 48 : index
    %c0_56 = arith.constant 0 : index
    %158 = vector.load %arg13[%c48, %c0_56] : memref<64x128xf32, #tpu.memory_space<vmem>>, vector<8x128xf32>
    %159 = vector.extract_strided_slice %158 {offsets = [0, 0], sizes = [8, 64], strides = [1, 1]} : vector<8x128xf32> to vector<8x64xf32>
    %160 = vector.extract_strided_slice %157 {offsets = [0, 0], sizes = [8, 64], strides = [1, 1]} : vector<8x128xf32> to vector<8x64xf32>
    %161 = arith.addf %159, %160 : vector<8x64xf32>
    %cst_57 = arith.constant 5.000000e-01 : f32
    %162 = vector.broadcast %cst_57 : f32 to vector<8x64xf32>
    %163 = arith.mulf %162, %161 : vector<8x64xf32>
    %164 = math.tanh %163 : vector<8x64xf32>
    %cst_58 = arith.constant 1.000000e+00 : f32
    %165 = vector.broadcast %cst_58 : f32 to vector<8x64xf32>
    %166 = arith.addf %164, %165 : vector<8x64xf32>
    %cst_59 = arith.constant 5.000000e-01 : f32
    %167 = vector.broadcast %cst_59 : f32 to vector<8x64xf32>
    %168 = arith.mulf %167, %166 : vector<8x64xf32>
    %169 = vector.extract_strided_slice %168 {offsets = [0, 0], sizes = [8, 32], strides = [1, 1]} : vector<8x64xf32> to vector<8x32xf32>
    %170 = vector.extract_strided_slice %168 {offsets = [0, 32], sizes = [8, 32], strides = [1, 1]} : vector<8x64xf32> to vector<8x32xf32>
    %171 = vector.extract_strided_slice %158 {offsets = [0, 64], sizes = [8, 32], strides = [1, 1]} : vector<8x128xf32> to vector<8x32xf32>
    %172 = vector.extract_strided_slice %157 {offsets = [0, 64], sizes = [8, 32], strides = [1, 1]} : vector<8x128xf32> to vector<8x32xf32>
    %173 = arith.mulf %169, %172 : vector<8x32xf32>
    %174 = arith.addf %171, %173 : vector<8x32xf32>
    %175 = math.tanh %174 : vector<8x32xf32>
    %176 = arith.subf %154, %175 : vector<8x32xf32>
    %177 = arith.mulf %170, %176 : vector<8x32xf32>
    %178 = arith.addf %175, %177 : vector<8x32xf32>
    %c48_60 = arith.constant 48 : index
    %c0_61 = arith.constant 0 : index
    %179 = vector.load %arg12[%c48_60, %c0_61] : memref<64x32xf32, #tpu.memory_space<vmem>>, vector<8x32xf32>
    tpu.vector_store %arg12[%c48_60, %c0_61], %178 {strides = array<i32>} : memref<64x32xf32, #tpu.memory_space<vmem>>, vector<8x32xf32>,
    %cst_62 = arith.constant dense<0.000000e+00> : vector<8x128xf32>
    %180 = tpu.matmul %178, %7, %cst_62 {dimension_numbers = #tpu.dot_dimension_numbers<[1], [0], [0], [1], [0, 0, 1, 1], [], []>} : vector<8x32xf32>, vector<32x128xf32>, vector<8x128xf32> -> vector<8x128xf32>
    %181 = arith.addf %180, %10 : vector<8x128xf32>
    %c56 = arith.constant 56 : index
    %c0_63 = arith.constant 0 : index
    %182 = vector.load %arg13[%c56, %c0_63] : memref<64x128xf32, #tpu.memory_space<vmem>>, vector<8x128xf32>
    %183 = vector.extract_strided_slice %182 {offsets = [0, 0], sizes = [8, 64], strides = [1, 1]} : vector<8x128xf32> to vector<8x64xf32>
    %184 = vector.extract_strided_slice %181 {offsets = [0, 0], sizes = [8, 64], strides = [1, 1]} : vector<8x128xf32> to vector<8x64xf32>
    %185 = arith.addf %183, %184 : vector<8x64xf32>
    %cst_64 = arith.constant 5.000000e-01 : f32
    %186 = vector.broadcast %cst_64 : f32 to vector<8x64xf32>
    %187 = arith.mulf %186, %185 : vector<8x64xf32>
    %188 = math.tanh %187 : vector<8x64xf32>
    %cst_65 = arith.constant 1.000000e+00 : f32
    %189 = vector.broadcast %cst_65 : f32 to vector<8x64xf32>
    %190 = arith.addf %188, %189 : vector<8x64xf32>
    %cst_66 = arith.constant 5.000000e-01 : f32
    %191 = vector.broadcast %cst_66 : f32 to vector<8x64xf32>
    %192 = arith.mulf %191, %190 : vector<8x64xf32>
    %193 = vector.extract_strided_slice %192 {offsets = [0, 0], sizes = [8, 32], strides = [1, 1]} : vector<8x64xf32> to vector<8x32xf32>
    %194 = vector.extract_strided_slice %192 {offsets = [0, 32], sizes = [8, 32], strides = [1, 1]} : vector<8x64xf32> to vector<8x32xf32>
    %195 = vector.extract_strided_slice %182 {offsets = [0, 64], sizes = [8, 32], strides = [1, 1]} : vector<8x128xf32> to vector<8x32xf32>
    %196 = vector.extract_strided_slice %181 {offsets = [0, 64], sizes = [8, 32], strides = [1, 1]} : vector<8x128xf32> to vector<8x32xf32>
    %197 = arith.mulf %193, %196 : vector<8x32xf32>
    %198 = arith.addf %195, %197 : vector<8x32xf32>
    %199 = math.tanh %198 : vector<8x32xf32>
    %200 = arith.subf %178, %199 : vector<8x32xf32>
    %201 = arith.mulf %194, %200 : vector<8x32xf32>
    %202 = arith.addf %199, %201 : vector<8x32xf32>
    %c56_67 = arith.constant 56 : index
    %c0_68 = arith.constant 0 : index
    %203 = vector.load %arg12[%c56_67, %c0_68] : memref<64x32xf32, #tpu.memory_space<vmem>>, vector<8x32xf32>
    tpu.vector_store %arg12[%c56_67, %c0_68], %202 {strides = array<i32>} : memref<64x32xf32, #tpu.memory_space<vmem>>, vector<8x32xf32>,
    %c0_69 = arith.constant 0 : index
    %c0_70 = arith.constant 0 : index
    %204 = vector.load %arg12[%c0_69, %c0_70] : memref<64x32xf32, #tpu.memory_space<vmem>>, vector<64x32xf32>
    %c0_71 = arith.constant 0 : index
    %c0_72 = arith.constant 0 : index
    %205 = vector.load %arg5[%c0_71, %c0_72] : memref<32x128xf32, #tpu.memory_space<vmem>>, vector<32x128xf32>
    %cst_73 = arith.constant dense<0.000000e+00> : vector<64x128xf32>
    %206 = tpu.matmul %204, %205, %cst_73 {dimension_numbers = #tpu.dot_dimension_numbers<[1], [0], [0], [1], [0, 0, 1, 1], [], []>} : vector<64x32xf32>, vector<32x128xf32>, vector<64x128xf32> -> vector<64x128xf32>
    %c0_74 = arith.constant 0 : index
    %c0_75 = arith.constant 0 : index
    %207 = vector.load %arg7[%c0_74, %c0_75] : memref<1x128xf32, #tpu.memory_space<vmem>>, vector<1x128xf32>
    %208 = vector.broadcast %207 : vector<1x128xf32> to vector<64x128xf32>
    %209 = arith.addf %206, %208 : vector<64x128xf32>
    %c0_76 = arith.constant 0 : index
    %c0_77 = arith.constant 0 : index
    %210 = vector.load %arg13[%c0_76, %c0_77] : memref<64x128xf32, #tpu.memory_space<vmem>>, vector<64x128xf32>
    tpu.vector_store %arg13[%c0_76, %c0_77], %209 {strides = array<i32>} : memref<64x128xf32, #tpu.memory_space<vmem>>, vector<64x128xf32>,
    %c0_78 = arith.constant 0 : index
    %c0_79 = arith.constant 0 : index
    %211 = vector.load %arg6[%c0_78, %c0_79] : memref<32x128xf32, #tpu.memory_space<vmem>>, vector<32x128xf32>
    %c0_80 = arith.constant 0 : index
    %c0_81 = arith.constant 0 : index
    %212 = vector.load %arg8[%c0_80, %c0_81] : memref<1x128xf32, #tpu.memory_space<vmem>>, vector<1x128xf32>
    %213 = vector.shape_cast %212 : vector<1x128xf32> to vector<1x128xf32>
    %214 = vector.broadcast %213 : vector<1x128xf32> to vector<8x128xf32>
    %cst_82 = arith.constant 0.000000e+00 : f32
    %215 = vector.broadcast %cst_82 : f32 to vector<8x32xf32>
    %cst_83 = arith.constant dense<0.000000e+00> : vector<8x128xf32>
    %216 = tpu.matmul %215, %211, %cst_83 {dimension_numbers = #tpu.dot_dimension_numbers<[1], [0], [0], [1], [0, 0, 1, 1], [], []>} : vector<8x32xf32>, vector<32x128xf32>, vector<8x128xf32> -> vector<8x128xf32>
    %217 = arith.addf %216, %214 : vector<8x128xf32>
    %c0_84 = arith.constant 0 : index
    %c0_85 = arith.constant 0 : index
    %218 = vector.load %arg13[%c0_84, %c0_85] : memref<64x128xf32, #tpu.memory_space<vmem>>, vector<8x128xf32>
    %219 = vector.extract_strided_slice %218 {offsets = [0, 0], sizes = [8, 64], strides = [1, 1]} : vector<8x128xf32> to vector<8x64xf32>
    %220 = vector.extract_strided_slice %217 {offsets = [0, 0], sizes = [8, 64], strides = [1, 1]} : vector<8x128xf32> to vector<8x64xf32>
    %221 = arith.addf %219, %220 : vector<8x64xf32>
    %cst_86 = arith.constant 5.000000e-01 : f32
    %222 = vector.broadcast %cst_86 : f32 to vector<8x64xf32>
    %223 = arith.mulf %222, %221 : vector<8x64xf32>
    %224 = math.tanh %223 : vector<8x64xf32>
    %cst_87 = arith.constant 1.000000e+00 : f32
    %225 = vector.broadcast %cst_87 : f32 to vector<8x64xf32>
    %226 = arith.addf %224, %225 : vector<8x64xf32>
    %cst_88 = arith.constant 5.000000e-01 : f32
    %227 = vector.broadcast %cst_88 : f32 to vector<8x64xf32>
    %228 = arith.mulf %227, %226 : vector<8x64xf32>
    %229 = vector.extract_strided_slice %228 {offsets = [0, 0], sizes = [8, 32], strides = [1, 1]} : vector<8x64xf32> to vector<8x32xf32>
    %230 = vector.extract_strided_slice %228 {offsets = [0, 32], sizes = [8, 32], strides = [1, 1]} : vector<8x64xf32> to vector<8x32xf32>
    %231 = vector.extract_strided_slice %218 {offsets = [0, 64], sizes = [8, 32], strides = [1, 1]} : vector<8x128xf32> to vector<8x32xf32>
    %232 = vector.extract_strided_slice %217 {offsets = [0, 64], sizes = [8, 32], strides = [1, 1]} : vector<8x128xf32> to vector<8x32xf32>
    %233 = arith.mulf %229, %232 : vector<8x32xf32>
    %234 = arith.addf %231, %233 : vector<8x32xf32>
    %235 = math.tanh %234 : vector<8x32xf32>
    %236 = arith.subf %215, %235 : vector<8x32xf32>
    %237 = arith.mulf %230, %236 : vector<8x32xf32>
    %238 = arith.addf %235, %237 : vector<8x32xf32>
    %cst_89 = arith.constant dense<0.000000e+00> : vector<8x128xf32>
    %239 = tpu.matmul %238, %211, %cst_89 {dimension_numbers = #tpu.dot_dimension_numbers<[1], [0], [0], [1], [0, 0, 1, 1], [], []>} : vector<8x32xf32>, vector<32x128xf32>, vector<8x128xf32> -> vector<8x128xf32>
    %240 = arith.addf %239, %214 : vector<8x128xf32>
    %c8_90 = arith.constant 8 : index
    %c0_91 = arith.constant 0 : index
    %241 = vector.load %arg13[%c8_90, %c0_91] : memref<64x128xf32, #tpu.memory_space<vmem>>, vector<8x128xf32>
    %242 = vector.extract_strided_slice %241 {offsets = [0, 0], sizes = [8, 64], strides = [1, 1]} : vector<8x128xf32> to vector<8x64xf32>
    %243 = vector.extract_strided_slice %240 {offsets = [0, 0], sizes = [8, 64], strides = [1, 1]} : vector<8x128xf32> to vector<8x64xf32>
    %244 = arith.addf %242, %243 : vector<8x64xf32>
    %cst_92 = arith.constant 5.000000e-01 : f32
    %245 = vector.broadcast %cst_92 : f32 to vector<8x64xf32>
    %246 = arith.mulf %245, %244 : vector<8x64xf32>
    %247 = math.tanh %246 : vector<8x64xf32>
    %cst_93 = arith.constant 1.000000e+00 : f32
    %248 = vector.broadcast %cst_93 : f32 to vector<8x64xf32>
    %249 = arith.addf %247, %248 : vector<8x64xf32>
    %cst_94 = arith.constant 5.000000e-01 : f32
    %250 = vector.broadcast %cst_94 : f32 to vector<8x64xf32>
    %251 = arith.mulf %250, %249 : vector<8x64xf32>
    %252 = vector.extract_strided_slice %251 {offsets = [0, 0], sizes = [8, 32], strides = [1, 1]} : vector<8x64xf32> to vector<8x32xf32>
    %253 = vector.extract_strided_slice %251 {offsets = [0, 32], sizes = [8, 32], strides = [1, 1]} : vector<8x64xf32> to vector<8x32xf32>
    %254 = vector.extract_strided_slice %241 {offsets = [0, 64], sizes = [8, 32], strides = [1, 1]} : vector<8x128xf32> to vector<8x32xf32>
    %255 = vector.extract_strided_slice %240 {offsets = [0, 64], sizes = [8, 32], strides = [1, 1]} : vector<8x128xf32> to vector<8x32xf32>
    %256 = arith.mulf %252, %255 : vector<8x32xf32>
    %257 = arith.addf %254, %256 : vector<8x32xf32>
    %258 = math.tanh %257 : vector<8x32xf32>
    %259 = arith.subf %238, %258 : vector<8x32xf32>
    %260 = arith.mulf %253, %259 : vector<8x32xf32>
    %261 = arith.addf %258, %260 : vector<8x32xf32>
    %cst_95 = arith.constant dense<0.000000e+00> : vector<8x128xf32>
    %262 = tpu.matmul %261, %211, %cst_95 {dimension_numbers = #tpu.dot_dimension_numbers<[1], [0], [0], [1], [0, 0, 1, 1], [], []>} : vector<8x32xf32>, vector<32x128xf32>, vector<8x128xf32> -> vector<8x128xf32>
    %263 = arith.addf %262, %214 : vector<8x128xf32>
    %c16_96 = arith.constant 16 : index
    %c0_97 = arith.constant 0 : index
    %264 = vector.load %arg13[%c16_96, %c0_97] : memref<64x128xf32, #tpu.memory_space<vmem>>, vector<8x128xf32>
    %265 = vector.extract_strided_slice %264 {offsets = [0, 0], sizes = [8, 64], strides = [1, 1]} : vector<8x128xf32> to vector<8x64xf32>
    %266 = vector.extract_strided_slice %263 {offsets = [0, 0], sizes = [8, 64], strides = [1, 1]} : vector<8x128xf32> to vector<8x64xf32>
    %267 = arith.addf %265, %266 : vector<8x64xf32>
    %cst_98 = arith.constant 5.000000e-01 : f32
    %268 = vector.broadcast %cst_98 : f32 to vector<8x64xf32>
    %269 = arith.mulf %268, %267 : vector<8x64xf32>
    %270 = math.tanh %269 : vector<8x64xf32>
    %cst_99 = arith.constant 1.000000e+00 : f32
    %271 = vector.broadcast %cst_99 : f32 to vector<8x64xf32>
    %272 = arith.addf %270, %271 : vector<8x64xf32>
    %cst_100 = arith.constant 5.000000e-01 : f32
    %273 = vector.broadcast %cst_100 : f32 to vector<8x64xf32>
    %274 = arith.mulf %273, %272 : vector<8x64xf32>
    %275 = vector.extract_strided_slice %274 {offsets = [0, 0], sizes = [8, 32], strides = [1, 1]} : vector<8x64xf32> to vector<8x32xf32>
    %276 = vector.extract_strided_slice %274 {offsets = [0, 32], sizes = [8, 32], strides = [1, 1]} : vector<8x64xf32> to vector<8x32xf32>
    %277 = vector.extract_strided_slice %264 {offsets = [0, 64], sizes = [8, 32], strides = [1, 1]} : vector<8x128xf32> to vector<8x32xf32>
    %278 = vector.extract_strided_slice %263 {offsets = [0, 64], sizes = [8, 32], strides = [1, 1]} : vector<8x128xf32> to vector<8x32xf32>
    %279 = arith.mulf %275, %278 : vector<8x32xf32>
    %280 = arith.addf %277, %279 : vector<8x32xf32>
    %281 = math.tanh %280 : vector<8x32xf32>
    %282 = arith.subf %261, %281 : vector<8x32xf32>
    %283 = arith.mulf %276, %282 : vector<8x32xf32>
    %284 = arith.addf %281, %283 : vector<8x32xf32>
    %cst_101 = arith.constant dense<0.000000e+00> : vector<8x128xf32>
    %285 = tpu.matmul %284, %211, %cst_101 {dimension_numbers = #tpu.dot_dimension_numbers<[1], [0], [0], [1], [0, 0, 1, 1], [], []>} : vector<8x32xf32>, vector<32x128xf32>, vector<8x128xf32> -> vector<8x128xf32>
    %286 = arith.addf %285, %214 : vector<8x128xf32>
    %c24_102 = arith.constant 24 : index
    %c0_103 = arith.constant 0 : index
    %287 = vector.load %arg13[%c24_102, %c0_103] : memref<64x128xf32, #tpu.memory_space<vmem>>, vector<8x128xf32>
    %288 = vector.extract_strided_slice %287 {offsets = [0, 0], sizes = [8, 64], strides = [1, 1]} : vector<8x128xf32> to vector<8x64xf32>
    %289 = vector.extract_strided_slice %286 {offsets = [0, 0], sizes = [8, 64], strides = [1, 1]} : vector<8x128xf32> to vector<8x64xf32>
    %290 = arith.addf %288, %289 : vector<8x64xf32>
    %cst_104 = arith.constant 5.000000e-01 : f32
    %291 = vector.broadcast %cst_104 : f32 to vector<8x64xf32>
    %292 = arith.mulf %291, %290 : vector<8x64xf32>
    %293 = math.tanh %292 : vector<8x64xf32>
    %cst_105 = arith.constant 1.000000e+00 : f32
    %294 = vector.broadcast %cst_105 : f32 to vector<8x64xf32>
    %295 = arith.addf %293, %294 : vector<8x64xf32>
    %cst_106 = arith.constant 5.000000e-01 : f32
    %296 = vector.broadcast %cst_106 : f32 to vector<8x64xf32>
    %297 = arith.mulf %296, %295 : vector<8x64xf32>
    %298 = vector.extract_strided_slice %297 {offsets = [0, 0], sizes = [8, 32], strides = [1, 1]} : vector<8x64xf32> to vector<8x32xf32>
    %299 = vector.extract_strided_slice %297 {offsets = [0, 32], sizes = [8, 32], strides = [1, 1]} : vector<8x64xf32> to vector<8x32xf32>
    %300 = vector.extract_strided_slice %287 {offsets = [0, 64], sizes = [8, 32], strides = [1, 1]} : vector<8x128xf32> to vector<8x32xf32>
    %301 = vector.extract_strided_slice %286 {offsets = [0, 64], sizes = [8, 32], strides = [1, 1]} : vector<8x128xf32> to vector<8x32xf32>
    %302 = arith.mulf %298, %301 : vector<8x32xf32>
    %303 = arith.addf %300, %302 : vector<8x32xf32>
    %304 = math.tanh %303 : vector<8x32xf32>
    %305 = arith.subf %284, %304 : vector<8x32xf32>
    %306 = arith.mulf %299, %305 : vector<8x32xf32>
    %307 = arith.addf %304, %306 : vector<8x32xf32>
    %cst_107 = arith.constant dense<0.000000e+00> : vector<8x128xf32>
    %308 = tpu.matmul %307, %211, %cst_107 {dimension_numbers = #tpu.dot_dimension_numbers<[1], [0], [0], [1], [0, 0, 1, 1], [], []>} : vector<8x32xf32>, vector<32x128xf32>, vector<8x128xf32> -> vector<8x128xf32>
    %309 = arith.addf %308, %214 : vector<8x128xf32>
    %c32_108 = arith.constant 32 : index
    %c0_109 = arith.constant 0 : index
    %310 = vector.load %arg13[%c32_108, %c0_109] : memref<64x128xf32, #tpu.memory_space<vmem>>, vector<8x128xf32>
    %311 = vector.extract_strided_slice %310 {offsets = [0, 0], sizes = [8, 64], strides = [1, 1]} : vector<8x128xf32> to vector<8x64xf32>
    %312 = vector.extract_strided_slice %309 {offsets = [0, 0], sizes = [8, 64], strides = [1, 1]} : vector<8x128xf32> to vector<8x64xf32>
    %313 = arith.addf %311, %312 : vector<8x64xf32>
    %cst_110 = arith.constant 5.000000e-01 : f32
    %314 = vector.broadcast %cst_110 : f32 to vector<8x64xf32>
    %315 = arith.mulf %314, %313 : vector<8x64xf32>
    %316 = math.tanh %315 : vector<8x64xf32>
    %cst_111 = arith.constant 1.000000e+00 : f32
    %317 = vector.broadcast %cst_111 : f32 to vector<8x64xf32>
    %318 = arith.addf %316, %317 : vector<8x64xf32>
    %cst_112 = arith.constant 5.000000e-01 : f32
    %319 = vector.broadcast %cst_112 : f32 to vector<8x64xf32>
    %320 = arith.mulf %319, %318 : vector<8x64xf32>
    %321 = vector.extract_strided_slice %320 {offsets = [0, 0], sizes = [8, 32], strides = [1, 1]} : vector<8x64xf32> to vector<8x32xf32>
    %322 = vector.extract_strided_slice %320 {offsets = [0, 32], sizes = [8, 32], strides = [1, 1]} : vector<8x64xf32> to vector<8x32xf32>
    %323 = vector.extract_strided_slice %310 {offsets = [0, 64], sizes = [8, 32], strides = [1, 1]} : vector<8x128xf32> to vector<8x32xf32>
    %324 = vector.extract_strided_slice %309 {offsets = [0, 64], sizes = [8, 32], strides = [1, 1]} : vector<8x128xf32> to vector<8x32xf32>
    %325 = arith.mulf %321, %324 : vector<8x32xf32>
    %326 = arith.addf %323, %325 : vector<8x32xf32>
    %327 = math.tanh %326 : vector<8x32xf32>
    %328 = arith.subf %307, %327 : vector<8x32xf32>
    %329 = arith.mulf %322, %328 : vector<8x32xf32>
    %330 = arith.addf %327, %329 : vector<8x32xf32>
    %cst_113 = arith.constant dense<0.000000e+00> : vector<8x128xf32>
    %331 = tpu.matmul %330, %211, %cst_113 {dimension_numbers = #tpu.dot_dimension_numbers<[1], [0], [0], [1], [0, 0, 1, 1], [], []>} : vector<8x32xf32>, vector<32x128xf32>, vector<8x128xf32> -> vector<8x128xf32>
    %332 = arith.addf %331, %214 : vector<8x128xf32>
    %c40_114 = arith.constant 40 : index
    %c0_115 = arith.constant 0 : index
    %333 = vector.load %arg13[%c40_114, %c0_115] : memref<64x128xf32, #tpu.memory_space<vmem>>, vector<8x128xf32>
    %334 = vector.extract_strided_slice %333 {offsets = [0, 0], sizes = [8, 64], strides = [1, 1]} : vector<8x128xf32> to vector<8x64xf32>
    %335 = vector.extract_strided_slice %332 {offsets = [0, 0], sizes = [8, 64], strides = [1, 1]} : vector<8x128xf32> to vector<8x64xf32>
    %336 = arith.addf %334, %335 : vector<8x64xf32>
    %cst_116 = arith.constant 5.000000e-01 : f32
    %337 = vector.broadcast %cst_116 : f32 to vector<8x64xf32>
    %338 = arith.mulf %337, %336 : vector<8x64xf32>
    %339 = math.tanh %338 : vector<8x64xf32>
    %cst_117 = arith.constant 1.000000e+00 : f32
    %340 = vector.broadcast %cst_117 : f32 to vector<8x64xf32>
    %341 = arith.addf %339, %340 : vector<8x64xf32>
    %cst_118 = arith.constant 5.000000e-01 : f32
    %342 = vector.broadcast %cst_118 : f32 to vector<8x64xf32>
    %343 = arith.mulf %342, %341 : vector<8x64xf32>
    %344 = vector.extract_strided_slice %343 {offsets = [0, 0], sizes = [8, 32], strides = [1, 1]} : vector<8x64xf32> to vector<8x32xf32>
    %345 = vector.extract_strided_slice %343 {offsets = [0, 32], sizes = [8, 32], strides = [1, 1]} : vector<8x64xf32> to vector<8x32xf32>
    %346 = vector.extract_strided_slice %333 {offsets = [0, 64], sizes = [8, 32], strides = [1, 1]} : vector<8x128xf32> to vector<8x32xf32>
    %347 = vector.extract_strided_slice %332 {offsets = [0, 64], sizes = [8, 32], strides = [1, 1]} : vector<8x128xf32> to vector<8x32xf32>
    %348 = arith.mulf %344, %347 : vector<8x32xf32>
    %349 = arith.addf %346, %348 : vector<8x32xf32>
    %350 = math.tanh %349 : vector<8x32xf32>
    %351 = arith.subf %330, %350 : vector<8x32xf32>
    %352 = arith.mulf %345, %351 : vector<8x32xf32>
    %353 = arith.addf %350, %352 : vector<8x32xf32>
    %cst_119 = arith.constant dense<0.000000e+00> : vector<8x128xf32>
    %354 = tpu.matmul %353, %211, %cst_119 {dimension_numbers = #tpu.dot_dimension_numbers<[1], [0], [0], [1], [0, 0, 1, 1], [], []>} : vector<8x32xf32>, vector<32x128xf32>, vector<8x128xf32> -> vector<8x128xf32>
    %355 = arith.addf %354, %214 : vector<8x128xf32>
    %c48_120 = arith.constant 48 : index
    %c0_121 = arith.constant 0 : index
    %356 = vector.load %arg13[%c48_120, %c0_121] : memref<64x128xf32, #tpu.memory_space<vmem>>, vector<8x128xf32>
    %357 = vector.extract_strided_slice %356 {offsets = [0, 0], sizes = [8, 64], strides = [1, 1]} : vector<8x128xf32> to vector<8x64xf32>
    %358 = vector.extract_strided_slice %355 {offsets = [0, 0], sizes = [8, 64], strides = [1, 1]} : vector<8x128xf32> to vector<8x64xf32>
    %359 = arith.addf %357, %358 : vector<8x64xf32>
    %cst_122 = arith.constant 5.000000e-01 : f32
    %360 = vector.broadcast %cst_122 : f32 to vector<8x64xf32>
    %361 = arith.mulf %360, %359 : vector<8x64xf32>
    %362 = math.tanh %361 : vector<8x64xf32>
    %cst_123 = arith.constant 1.000000e+00 : f32
    %363 = vector.broadcast %cst_123 : f32 to vector<8x64xf32>
    %364 = arith.addf %362, %363 : vector<8x64xf32>
    %cst_124 = arith.constant 5.000000e-01 : f32
    %365 = vector.broadcast %cst_124 : f32 to vector<8x64xf32>
    %366 = arith.mulf %365, %364 : vector<8x64xf32>
    %367 = vector.extract_strided_slice %366 {offsets = [0, 0], sizes = [8, 32], strides = [1, 1]} : vector<8x64xf32> to vector<8x32xf32>
    %368 = vector.extract_strided_slice %366 {offsets = [0, 32], sizes = [8, 32], strides = [1, 1]} : vector<8x64xf32> to vector<8x32xf32>
    %369 = vector.extract_strided_slice %356 {offsets = [0, 64], sizes = [8, 32], strides = [1, 1]} : vector<8x128xf32> to vector<8x32xf32>
    %370 = vector.extract_strided_slice %355 {offsets = [0, 64], sizes = [8, 32], strides = [1, 1]} : vector<8x128xf32> to vector<8x32xf32>
    %371 = arith.mulf %367, %370 : vector<8x32xf32>
    %372 = arith.addf %369, %371 : vector<8x32xf32>
    %373 = math.tanh %372 : vector<8x32xf32>
    %374 = arith.subf %353, %373 : vector<8x32xf32>
    %375 = arith.mulf %368, %374 : vector<8x32xf32>
    %376 = arith.addf %373, %375 : vector<8x32xf32>
    %cst_125 = arith.constant dense<0.000000e+00> : vector<8x128xf32>
    %377 = tpu.matmul %376, %211, %cst_125 {dimension_numbers = #tpu.dot_dimension_numbers<[1], [0], [0], [1], [0, 0, 1, 1], [], []>} : vector<8x32xf32>, vector<32x128xf32>, vector<8x128xf32> -> vector<8x128xf32>
    %378 = arith.addf %377, %214 : vector<8x128xf32>
    %c56_126 = arith.constant 56 : index
    %c0_127 = arith.constant 0 : index
    %379 = vector.load %arg13[%c56_126, %c0_127] : memref<64x128xf32, #tpu.memory_space<vmem>>, vector<8x128xf32>
    %380 = vector.extract_strided_slice %379 {offsets = [0, 0], sizes = [8, 64], strides = [1, 1]} : vector<8x128xf32> to vector<8x64xf32>
    %381 = vector.extract_strided_slice %378 {offsets = [0, 0], sizes = [8, 64], strides = [1, 1]} : vector<8x128xf32> to vector<8x64xf32>
    %382 = arith.addf %380, %381 : vector<8x64xf32>
    %cst_128 = arith.constant 5.000000e-01 : f32
    %383 = vector.broadcast %cst_128 : f32 to vector<8x64xf32>
    %384 = arith.mulf %383, %382 : vector<8x64xf32>
    %385 = math.tanh %384 : vector<8x64xf32>
    %cst_129 = arith.constant 1.000000e+00 : f32
    %386 = vector.broadcast %cst_129 : f32 to vector<8x64xf32>
    %387 = arith.addf %385, %386 : vector<8x64xf32>
    %cst_130 = arith.constant 5.000000e-01 : f32
    %388 = vector.broadcast %cst_130 : f32 to vector<8x64xf32>
    %389 = arith.mulf %388, %387 : vector<8x64xf32>
    %390 = vector.extract_strided_slice %389 {offsets = [0, 0], sizes = [8, 32], strides = [1, 1]} : vector<8x64xf32> to vector<8x32xf32>
    %391 = vector.extract_strided_slice %389 {offsets = [0, 32], sizes = [8, 32], strides = [1, 1]} : vector<8x64xf32> to vector<8x32xf32>
    %392 = vector.extract_strided_slice %379 {offsets = [0, 64], sizes = [8, 32], strides = [1, 1]} : vector<8x128xf32> to vector<8x32xf32>
    %393 = vector.extract_strided_slice %378 {offsets = [0, 64], sizes = [8, 32], strides = [1, 1]} : vector<8x128xf32> to vector<8x32xf32>
    %394 = arith.mulf %390, %393 : vector<8x32xf32>
    %395 = arith.addf %392, %394 : vector<8x32xf32>
    %396 = math.tanh %395 : vector<8x32xf32>
    %397 = arith.subf %376, %396 : vector<8x32xf32>
    %398 = arith.mulf %391, %397 : vector<8x32xf32>
    %399 = arith.addf %396, %398 : vector<8x32xf32>
    %c0_131 = arith.constant 0 : index
    %c0_132 = arith.constant 0 : index
    %400 = vector.load %arg9[%c0_131, %c0_132] : memref<32x128xf32, #tpu.memory_space<vmem>>, vector<32x128xf32>
    %cst_133 = arith.constant dense<0.000000e+00> : vector<8x128xf32>
    %401 = tpu.matmul %399, %400, %cst_133 {dimension_numbers = #tpu.dot_dimension_numbers<[1], [0], [0], [1], [0, 0, 1, 1], [], []>} : vector<8x32xf32>, vector<32x128xf32>, vector<8x128xf32> -> vector<8x128xf32>
    %c0_134 = arith.constant 0 : index
    %c0_135 = arith.constant 0 : index
    %402 = vector.load %arg10[%c0_134, %c0_135] : memref<1x128xf32, #tpu.memory_space<vmem>>, vector<1x128xf32>
    %403 = vector.broadcast %402 : vector<1x128xf32> to vector<8x128xf32>
    %404 = arith.addf %401, %403 : vector<8x128xf32>
    %c0_136 = arith.constant 0 : index
    %c0_137 = arith.constant 0 : index
    %405 = vector.load %arg11[%c0_136, %c0_137] : memref<8x128xf32, #tpu.memory_space<vmem>>, vector<8x128xf32>
    tpu.vector_store %arg11[%c0_136, %c0_137], %404 {strides = array<i32>} : memref<8x128xf32, #tpu.memory_space<vmem>>, vector<8x128xf32>,
    return
  }
}

</mosaic_0001>

<llo_original>
// kernel: gru_model_forward.1
$region0: #{gru_model_forward.1}
  #allocation0 [shape = 'u32[]', space=smem, size = 0x4, offset = 0x4, fixed_abs, tag = 'smem constant byte address 0x4 - core index']
  #allocation1 [shape = 'u32[144,128]{1,0:T(1,128)}', space=vmem, size = 0x12000, scoped, tag = 'internal scratch']
  #allocation2 [shape = 'f32[64,32]{1,0:T(8,128)}', space=vmem, size = 0x8000, scoped, tag = 'scratch operand']
  #allocation3 [shape = 'f32[64,128]{1,0:T(8,128)}', space=vmem, size = 0x8000, scoped, tag = 'scratch operand']
  %s0 = inlined_call_operand.vmem [shape: f32[64,16], index: 0, kind: input, shape index: {}]
  %s1 = inlined_call_operand.hbm [shape: f32[16,128], index: 1, kind: input, shape index: {}]
  %s2 = inlined_call_operand.vmem [shape: f32[32,128], index: 2, kind: input, shape index: {}]
  %s3 = inlined_call_operand.vmem [shape: f32[1,128], index: 3, kind: input, shape index: {}]
  %s4 = inlined_call_operand.vmem [shape: f32[1,128], index: 4, kind: input, shape index: {}]
  %s5 = inlined_call_operand.vmem [shape: f32[32,128], index: 5, kind: input, shape index: {}]
  %s6 = inlined_call_operand.vmem [shape: f32[32,128], index: 6, kind: input, shape index: {}]
  %s7 = inlined_call_operand.vmem [shape: f32[1,128], index: 7, kind: input, shape index: {}]
  %s8 = inlined_call_operand.vmem [shape: f32[1,128], index: 8, kind: input, shape index: {}]
  %s9 = inlined_call_operand.vmem [shape: f32[32,128], index: 9, kind: input, shape index: {}]
  %s10 = inlined_call_operand.vmem [shape: f32[1,128], index: 10, kind: input, shape index: {}]
  %s11 = inlined_call_operand.vmem [shape: f32[8,128], index: 11, kind: output, shape index: {}]
  %s12 = sld [smem:[#allocation0]]
  $region58: #{gru_model_forward.1} parent=0
    _
  %s14 = ssub.s32 1, %s12
  %s15 = scalar_select 0, %s14, %s12
  $region1: #{gru_model_forward.1} parent=0
    #allocation4 [shape = 'u8[8192]{0}', space=vmem, size = 0x2000, scoped, tag = 'input window, operand 1, single buffered']
    #allocation5 [shape = 's32[1]{0}', space=sflag, size = 0x4, scoped, tag = 'scoped memory for gru_model_forward.1']
    %16 = vsyncpa [#allocation5], 0
    // Predicated region
    $region2: #{gru_model_forward.1} parent=1 // pred_check
      _
    $region3: #{gru_model_forward.1} parent=1 // pred_check_branch
      %18 = sbr.rel (0) target = $region5
    $region4: #{gru_model_forward.1} parent=1 // pred_region
      _
    $region5: #{gru_model_forward.1} parent=1 // pred_fallthru
      _
    // Predicated region
    $region6: #{gru_model_forward.1} parent=1 // pred_check
      _
    $region7: #{gru_model_forward.1} parent=1 // pred_check_branch
      %20 = sbr.rel (0) target = $region9
    $region8: #{gru_model_forward.1} parent=1 // pred_region
      %s22 = ssub.s32 256, 256
      %23 = vsyncadd [#allocation5], %s22
      %s24 = sshll.u32 [#allocation4], 4
      %s25 = int_to_ptr.vmem [resolvable:$true] %s24
      %30 = dma.hbm_to_vmem [thread:$0]  %s1, 256, %s25, [#allocation5], 128, 128, 8
    $region9: #{gru_model_forward.1} parent=1 // pred_fallthru
      _
    // Predicated region
    $region10: #{gru_model_forward.1} parent=1 // pred_check
      _
    $region11: #{gru_model_forward.1} parent=1 // pred_check_branch
      %32 = sbr.rel (0) target = $region13
    $region12: #{gru_model_forward.1} parent=1 // pred_region
      _
    $region13: #{gru_model_forward.1} parent=1 // pred_fallthru
      _
    // Predicated region
    $region14: #{gru_model_forward.1} parent=1 // pred_check
      _
    $region15: #{gru_model_forward.1} parent=1 // pred_check_branch
      %34 = sbr.rel (0) target = $region17
    $region16: #{gru_model_forward.1} parent=1 // pred_region
      _
    $region17: #{gru_model_forward.1} parent=1 // pred_fallthru
      _
    // Predicated region
    $region18: #{gru_model_forward.1} parent=1 // pred_check
      _
    $region19: #{gru_model_forward.1} parent=1 // pred_check_branch
      %36 = sbr.rel (0) target = $region21
    $region20: #{gru_model_forward.1} parent=1 // pred_region
      _
    $region21: #{gru_model_forward.1} parent=1 // pred_fallthru
      _
    // Predicated region
    $region22: #{gru_model_forward.1} parent=1 // pred_check
      _
    $region23: #{gru_model_forward.1} parent=1 // pred_check_branch
      %38 = sbr.rel (0) target = $region25
    $region24: #{gru_model_forward.1} parent=1 // pred_region
      _
    $region25: #{gru_model_forward.1} parent=1 // pred_fallthru
      _
    // Predicated region
    $region26: #{gru_model_forward.1} parent=1 // pred_check
      _
    $region27: #{gru_model_forward.1} parent=1 // pred_check_branch
      %40 = sbr.rel (0) target = $region29
    $region28: #{gru_model_forward.1} parent=1 // pred_region
      _
    $region29: #{gru_model_forward.1} parent=1 // pred_fallthru
      _
    // Predicated region
    $region30: #{gru_model_forward.1} parent=1 // pred_check
      _
    $region31: #{gru_model_forward.1} parent=1 // pred_check_branch
      %42 = sbr.rel (0) target = $region33
    $region32: #{gru_model_forward.1} parent=1 // pred_region
      _
    $region33: #{gru_model_forward.1} parent=1 // pred_fallthru
      _
    // Predicated region
    $region34: #{gru_model_forward.1} parent=1 // pred_check
      _
    $region35: #{gru_model_forward.1} parent=1 // pred_check_branch
      %44 = sbr.rel (0) target = $region37
    $region36: #{gru_model_forward.1} parent=1 // pred_region
      _
    $region37: #{gru_model_forward.1} parent=1 // pred_fallthru
      _
    // Predicated region
    $region38: #{gru_model_forward.1} parent=1 // pred_check
      _
    $region39: #{gru_model_forward.1} parent=1 // pred_check_branch
      %46 = sbr.rel (0) target = $region41
    $region40: #{gru_model_forward.1} parent=1 // pred_region
      _
    $region41: #{gru_model_forward.1} parent=1 // pred_fallthru
      _
    // Predicated region
    $region42: #{gru_model_forward.1} parent=1 // pred_check
      _
    $region43: #{gru_model_forward.1} parent=1 // pred_check_branch
      %48 = sbr.rel (0) target = $region45
    $region44: #{gru_model_forward.1} parent=1 // pred_region
      _
    $region45: #{gru_model_forward.1} parent=1 // pred_fallthru
      _
    // Predicated region
    $region46: #{gru_model_forward.1} parent=1 // pred_check
      _
    $region47: #{gru_model_forward.1} parent=1 // pred_check_branch
      %50 = sbr.rel (0) target = $region49
    $region48: #{gru_model_forward.1} parent=1 // pred_region
      %51 = dma.done [#allocation5], 256
    $region49: #{gru_model_forward.1} parent=1 // pred_fallthru
      _
    %v52 = vld [vmem:[%s0] sm:$0xff]
    %v53 = vld [vmem:[%s0 + $0x8] sm:$0xff]
    %v54 = vld [vmem:[%s0 + $0x10] sm:$0xff]
    %v55 = vld [vmem:[%s0 + $0x18] sm:$0xff]
    %v56 = vld [vmem:[%s0 + $0x20] sm:$0xff]
    %v57 = vld [vmem:[%s0 + $0x28] sm:$0xff]
    %v58 = vld [vmem:[%s0 + $0x30] sm:$0xff]
    %v59 = vld [vmem:[%s0 + $0x38] sm:$0xff]
    %v60 = vld [vmem:[#allocation4] sm:$0xff]
    %v61 = vld [vmem:[#allocation4 + $0x8] sm:$0xff]
    %v62 = vld [vmem:[%s3] sm:$0x1]
    %v64 = vlaneseq
    %v65 = vshrl.u32 %v64, 7
    %v66 = vsub.s32 0, %v65
    %v67 = vrot.slane %v62, %v66
    %vm69 = vcmask 130048
    %v71 = vsel %vm69, %v52, 0
    %v74 = vsel %vm69, %v53, 0
    %v77 = vsel %vm69, %v54, 0
    %v80 = vsel %vm69, %v55, 0
    %v83 = vsel %vm69, %v56, 0
    %v86 = vsel %vm69, %v57, 0
    %v89 = vsel %vm69, %v58, 0
    %v92 = vsel %vm69, %v59, 0
    %94 = vmatprep.subr.mxu0 0.0
    %95 = vmatpush1.msra.mxu0 %v60
    %96 = vmatprep.subr.mxu0 0.0
    %97 = vmatpush1.msra.mxu0 %v61
    %98 = vmatprep.subr.mxu0 0.0
    %99 = vmatpush1.msra.mxu0 0.0
    %100 = vmatprep.subr.mxu0 0.0
    %101 = vmatpush1.msra.mxu0 0.0
    %102 = vmatprep.subr.mxu0 0.0
    %103 = vmatpush1.msra.mxu0 0.0
    %104 = vmatprep.subr.mxu0 0.0
    %105 = vmatpush1.msra.mxu0 0.0
    %106 = vmatprep.subr.mxu0 0.0
    %107 = vmatpush1.msra.mxu0 0.0
    %108 = vmatprep.subr.mxu0 0.0
    %109 = vmatpush1.msra.mxu0 0.0
    %110 = vmatprep.subr.mxu0 0.0
    %111 = vmatpush1.msra.mxu0 0.0
    %112 = vmatprep.subr.mxu0 0.0
    %113 = vmatpush1.msra.mxu0 0.0
    %114 = vmatprep.subr.mxu0 0.0
    %115 = vmatpush1.msra.mxu0 0.0
    %116 = vmatprep.subr.mxu0 0.0
    %117 = vmatpush1.msra.mxu0 0.0
    %118 = vmatprep.subr.mxu0 0.0
    %119 = vmatpush1.msra.mxu0 0.0
    %120 = vmatprep.subr.mxu0 0.0
    %121 = vmatpush1.msra.mxu0 0.0
    %122 = vmatprep.subr.mxu0 0.0
    %123 = vmatpush1.msra.mxu0 0.0
    %124 = vmatprep.subr.mxu0 0.0
    %125 = vmatpush1.msra.mxu0 0.0
    %126 = vmatprep.subr.mxu0 0.0
    %127 = vmatpush1.msra.mxu0 0.0
    %128 = vmatprep.subr.mxu0 0.0
    %129 = vmatpush1.msra.mxu0 0.0
    %130 = vmatprep.subr.mxu0 0.0
    %131 = vmatpush1.msra.mxu0 0.0
    %132 = vmatprep.subr.mxu0 0.0
    %133 = vmatpush1.msra.mxu0 0.0
    %134 = vmatprep.subr.mxu0 0.0
    %135 = vmatpush1.msra.mxu0 0.0
    %136 = vmatprep.subr.mxu0 0.0
    %137 = vmatpush1.msra.mxu0 0.0
    %138 = vmatprep.subr.mxu0 0.0
    %139 = vmatpush1.msra.mxu0 0.0
    %140 = vmatprep.subr.mxu0 0.0
    %141 = vmatpush1.msra.mxu0 0.0
    %142 = vmatprep.subr.mxu0 0.0
    %143 = vmatpush1.msra.mxu0 0.0
    %144 = vmatprep.subr.mxu0 0.0
    %145 = vmatpush1.msra.mxu0 0.0
    %146 = vmatprep.subr.mxu0 0.0
    %147 = vmatpush1.msra.mxu0 0.0
    %148 = vmatprep.subr.mxu0 0.0
    %149 = vmatpush1.msra.mxu0 0.0
    %150 = vmatprep.subr.mxu0 0.0
    %151 = vmatpush1.msra.mxu0 0.0
    %152 = vmatprep.subr.mxu0 0.0
    %153 = vmatpush1.msra.mxu0 0.0
    %154 = vmatprep.subr.mxu0 0.0
    %155 = vmatpush1.msra.mxu0 0.0
    %156 = vmatprep.subr.mxu0 0.0
    %157 = vmatpush1.msra.mxu0 0.0
    %158 = vmatprep.mubr.f32.mxu0 0.0
    %159 = vmatmul.mubr.f32.gmra.mrb[0].mxu0 %v71
    %v160 = vpop.f32.mrb[0].mxu0
    %v161 = vadd.f32 %v67, %v160
    %v162 = vpop.f32.mrb[0].mxu0
    %163 = vmatprep.mubr.f32.mxu0 0.0
    %164 = vmatmul.mubr.f32.gmra.mrb[0].mxu0 %v74
    %v165 = vpop.f32.mrb[0].mxu0
    %v166 = vadd.f32 %v67, %v165
    %v167 = vpop.f32.mrb[0].mxu0
    %168 = vmatprep.mubr.f32.mxu0 0.0
    %169 = vmatmul.mubr.f32.gmra.mrb[0].mxu0 %v77
    %v170 = vpop.f32.mrb[0].mxu0
    %v171 = vadd.f32 %v67, %v170
    %v172 = vpop.f32.mrb[0].mxu0
    %173 = vmatprep.mubr.f32.mxu0 0.0
    %174 = vmatmul.mubr.f32.gmra.mrb[0].mxu0 %v80
    %v175 = vpop.f32.mrb[0].mxu0
    %v176 = vadd.f32 %v67, %v175
    %v177 = vpop.f32.mrb[0].mxu0
    %178 = vmatprep.mubr.f32.mxu0 0.0
    %179 = vmatmul.mubr.f32.gmra.mrb[0].mxu0 %v83
    %v180 = vpop.f32.mrb[0].mxu0
    %v181 = vadd.f32 %v67, %v180
    %v182 = vpop.f32.mrb[0].mxu0
    %183 = vmatprep.mubr.f32.mxu0 0.0
    %184 = vmatmul.mubr.f32.gmra.mrb[0].mxu0 %v86
    %v185 = vpop.f32.mrb[0].mxu0
    %v186 = vadd.f32 %v67, %v185
    %v187 = vpop.f32.mrb[0].mxu0
    %188 = vmatprep.mubr.f32.mxu0 0.0
    %189 = vmatmul.mubr.f32.gmra.mrb[0].mxu0 %v89
    %v190 = vpop.f32.mrb[0].mxu0
    %v191 = vadd.f32 %v67, %v190
    %v192 = vpop.f32.mrb[0].mxu0
    %193 = vmatprep.mubr.f32.mxu0 0.0
    %194 = vmatmul.mubr.f32.gmra.mrb[0].mxu0 %v92
    %v195 = vpop.f32.mrb[0].mxu0
    %v196 = vadd.f32 %v67, %v195
    %v197 = vpop.f32.mrb[0].mxu0
    %198 = vdwg.mxu0
    %199 = vst [vmem:[#allocation3] sm:$0xff] %v161
    %200 = vst [vmem:[#allocation3 + $0x8] sm:$0xff] %v166
    %201 = vst [vmem:[#allocation3 + $0x10] sm:$0xff] %v171
    %202 = vst [vmem:[#allocation3 + $0x18] sm:$0xff] %v176
    %203 = vst [vmem:[#allocation3 + $0x20] sm:$0xff] %v181
    %204 = vst [vmem:[#allocation3 + $0x28] sm:$0xff] %v186
    %205 = vst [vmem:[#allocation3 + $0x30] sm:$0xff] %v191
    %206 = vst [vmem:[#allocation3 + $0x38] sm:$0xff] %v196
    %v207 = vld [vmem:[%s2] sm:$0xff]
    %v208 = vld [vmem:[%s2 + $0x8] sm:$0xff]
    %v209 = vld [vmem:[%s2 + $0x10] sm:$0xff]
    %v210 = vld [vmem:[%s2 + $0x18] sm:$0xff]
    %v211 = vld [vmem:[%s4] sm:$0x1]
    %v213 = vlaneseq
    %v214 = vshrl.u32 %v213, 7
    %v215 = vsub.s32 0, %v214
    %v216 = vrot.slane %v211, %v215
    %vm218 = vcmask 261120
    %v220 = vsel %vm218, 0.0, 0
    %222 = vmatprep.subr.mxu0 0.0
    %223 = vmatpush1.msra.mxu0 %v207
    %224 = vmatprep.subr.mxu0 0.0
    %225 = vmatpush1.msra.mxu0 %v208
    %226 = vmatprep.subr.mxu0 0.0
    %227 = vmatpush1.msra.mxu0 %v209
    %228 = vmatprep.subr.mxu0 0.0
    %229 = vmatpush1.msra.mxu0 %v210
    %230 = vmatprep.subr.mxu0 0.0
    %231 = vmatpush1.msra.mxu0 0.0
    %232 = vmatprep.subr.mxu0 0.0
    %233 = vmatpush1.msra.mxu0 0.0
    %234 = vmatprep.subr.mxu0 0.0
    %235 = vmatpush1.msra.mxu0 0.0
    %236 = vmatprep.subr.mxu0 0.0
    %237 = vmatpush1.msra.mxu0 0.0
    %238 = vmatprep.subr.mxu0 0.0
    %239 = vmatpush1.msra.mxu0 0.0
    %240 = vmatprep.subr.mxu0 0.0
    %241 = vmatpush1.msra.mxu0 0.0
    %242 = vmatprep.subr.mxu0 0.0
    %243 = vmatpush1.msra.mxu0 0.0
    %244 = vmatprep.subr.mxu0 0.0
    %245 = vmatpush1.msra.mxu0 0.0
    %246 = vmatprep.subr.mxu0 0.0
    %247 = vmatpush1.msra.mxu0 0.0
    %248 = vmatprep.subr.mxu0 0.0
    %249 = vmatpush1.msra.mxu0 0.0
    %250 = vmatprep.subr.mxu0 0.0
    %251 = vmatpush1.msra.mxu0 0.0
    %252 = vmatprep.subr.mxu0 0.0
    %253 = vmatpush1.msra.mxu0 0.0
    %254 = vmatprep.subr.mxu0 0.0
    %255 = vmatpush1.msra.mxu0 0.0
    %256 = vmatprep.subr.mxu0 0.0
    %257 = vmatpush1.msra.mxu0 0.0
    %258 = vmatprep.subr.mxu0 0.0
    %259 = vmatpush1.msra.mxu0 0.0
    %260 = vmatprep.subr.mxu0 0.0
    %261 = vmatpush1.msra.mxu0 0.0
    %262 = vmatprep.subr.mxu0 0.0
    %263 = vmatpush1.msra.mxu0 0.0
    %264 = vmatprep.subr.mxu0 0.0
    %265 = vmatpush1.msra.mxu0 0.0
    %266 = vmatprep.subr.mxu0 0.0
    %267 = vmatpush1.msra.mxu0 0.0
    %268 = vmatprep.subr.mxu0 0.0
    %269 = vmatpush1.msra.mxu0 0.0
    %270 = vmatprep.subr.mxu0 0.0
    %271 = vmatpush1.msra.mxu0 0.0
    %272 = vmatprep.subr.mxu0 0.0
    %273 = vmatpush1.msra.mxu0 0.0
    %274 = vmatprep.subr.mxu0 0.0
    %275 = vmatpush1.msra.mxu0 0.0
    %276 = vmatprep.subr.mxu0 0.0
    %277 = vmatpush1.msra.mxu0 0.0
    %278 = vmatprep.subr.mxu0 0.0
    %279 = vmatpush1.msra.mxu0 0.0
    %280 = vmatprep.subr.mxu0 0.0
    %281 = vmatpush1.msra.mxu0 0.0
    %282 = vmatprep.subr.mxu0 0.0
    %283 = vmatpush1.msra.mxu0 0.0
    %284 = vmatprep.subr.mxu0 0.0
    %285 = vmatpush1.msra.mxu0 0.0
    %286 = vmatprep.mubr.f32.mxu0 0.0
    %287 = vmatmul.mubr.f32.gmra.mrb[0].mxu0 %v220
    %v288 = vpop.f32.mrb[0].mxu0
    %v289 = vadd.f32 %v216, %v288
    %v290 = vpop.f32.mrb[0].mxu0
    %291 = vdwg.mxu0
    %v292 = vld [vmem:[#allocation3] sm:$0xff]
    %v293 = vadd.f32 %v292, %v289
    %v294 = vmul.f32 %v293, 0.5
    %v295 = vtanh.pop %v294
    %v296 = vadd.f32 %v295, 1.0
    %v297 = vmul.f32 %v296, 0.5
    %299 = vrot.lane.b32.xlu0 %v289, 64
    %v300 = vpop.permute.xlu0 %299
    %v302 = vmul.f32 %v297, %v300
    %304 = vrot.lane.b32.xlu0 %v302, 64
    %v305 = vpop.permute.xlu0 %304
    %v307 = vadd.f32 %v292, %v305
    %v308 = vtanh.pop %v307
    %v309 = vsub.f32 0.0, %v308
    %311 = vrot.lane.b32.xlu0 %v309, 96
    %v312 = vpop.permute.xlu0 %311
    %v314 = vmul.f32 %v297, %v312
    %316 = vrot.lane.b32.xlu0 %v314, 32
    %v317 = vpop.permute.xlu0 %316
    %v319 = vadd.f32 %v308, %v317
    %321 = vrot.lane.b32.xlu0 %v319, 64
    %v322 = vpop.permute.xlu0 %321
    %324 = vst.msk [vmem:[#allocation2] sm:$0xff] %vm218, %v322
    %v325 = vsel %vm218, %v322, 0
    %327 = vmatprep.subr.mxu0 0.0
    %328 = vmatpush1.msra.mxu0 %v207
    %329 = vmatprep.subr.mxu0 0.0
    %330 = vmatpush1.msra.mxu0 %v208
    %331 = vmatprep.subr.mxu0 0.0
    %332 = vmatpush1.msra.mxu0 %v209
    %333 = vmatprep.subr.mxu0 0.0
    %334 = vmatpush1.msra.mxu0 %v210
    %335 = vmatprep.subr.mxu0 0.0
    %336 = vmatpush1.msra.mxu0 0.0
    %337 = vmatprep.subr.mxu0 0.0
    %338 = vmatpush1.msra.mxu0 0.0
    %339 = vmatprep.subr.mxu0 0.0
    %340 = vmatpush1.msra.mxu0 0.0
    %341 = vmatprep.subr.mxu0 0.0
    %342 = vmatpush1.msra.mxu0 0.0
    %343 = vmatprep.subr.mxu0 0.0
    %344 = vmatpush1.msra.mxu0 0.0
    %345 = vmatprep.subr.mxu0 0.0
    %346 = vmatpush1.msra.mxu0 0.0
    %347 = vmatprep.subr.mxu0 0.0
    %348 = vmatpush1.msra.mxu0 0.0
    %349 = vmatprep.subr.mxu0 0.0
    %350 = vmatpush1.msra.mxu0 0.0
    %351 = vmatprep.subr.mxu0 0.0
    %352 = vmatpush1.msra.mxu0 0.0
    %353 = vmatprep.subr.mxu0 0.0
    %354 = vmatpush1.msra.mxu0 0.0
    %355 = vmatprep.subr.mxu0 0.0
    %356 = vmatpush1.msra.mxu0 0.0
    %357 = vmatprep.subr.mxu0 0.0
    %358 = vmatpush1.msra.mxu0 0.0
    %359 = vmatprep.subr.mxu0 0.0
    %360 = vmatpush1.msra.mxu0 0.0
    %361 = vmatprep.subr.mxu0 0.0
    %362 = vmatpush1.msra.mxu0 0.0
    %363 = vmatprep.subr.mxu0 0.0
    %364 = vmatpush1.msra.mxu0 0.0
    %365 = vmatprep.subr.mxu0 0.0
    %366 = vmatpush1.msra.mxu0 0.0
    %367 = vmatprep.subr.mxu0 0.0
    %368 = vmatpush1.msra.mxu0 0.0
    %369 = vmatprep.subr.mxu0 0.0
    %370 = vmatpush1.msra.mxu0 0.0
    %371 = vmatprep.subr.mxu0 0.0
    %372 = vmatpush1.msra.mxu0 0.0
    %373 = vmatprep.subr.mxu0 0.0
    %374 = vmatpush1.msra.mxu0 0.0
    %375 = vmatprep.subr.mxu0 0.0
    %376 = vmatpush1.msra.mxu0 0.0
    %377 = vmatprep.subr.mxu0 0.0
    %378 = vmatpush1.msra.mxu0 0.0
    %379 = vmatprep.subr.mxu0 0.0
    %380 = vmatpush1.msra.mxu0 0.0
    %381 = vmatprep.subr.mxu0 0.0
    %382 = vmatpush1.msra.mxu0 0.0
    %383 = vmatprep.subr.mxu0 0.0
    %384 = vmatpush1.msra.mxu0 0.0
    %385 = vmatprep.subr.mxu0 0.0
    %386 = vmatpush1.msra.mxu0 0.0
    %387 = vmatprep.subr.mxu0 0.0
    %388 = vmatpush1.msra.mxu0 0.0
    %389 = vmatprep.subr.mxu0 0.0
    %390 = vmatpush1.msra.mxu0 0.0
    %391 = vmatprep.mubr.f32.mxu0 0.0
    %392 = vmatmul.mubr.f32.gmra.mrb[0].mxu0 %v325
    %v393 = vpop.f32.mrb[0].mxu0
    %v394 = vadd.f32 %v216, %v393
    %v395 = vpop.f32.mrb[0].mxu0
    %396 = vdwg.mxu0
    %v397 = vld [vmem:[#allocation3 + $0x8] sm:$0xff]
    %v398 = vadd.f32 %v397, %v394
    %v399 = vmul.f32 %v398, 0.5
    %v400 = vtanh.pop %v399
    %v401 = vadd.f32 %v400, 1.0
    %v402 = vmul.f32 %v401, 0.5
    %404 = vrot.lane.b32.xlu0 %v394, 64
    %v405 = vpop.permute.xlu0 %404
    %v407 = vmul.f32 %v402, %v405
    %409 = vrot.lane.b32.xlu0 %v407, 64
    %v410 = vpop.permute.xlu0 %409
    %v412 = vadd.f32 %v397, %v410
    %v413 = vtanh.pop %v412
    %v414 = vsub.f32 %v319, %v413
    %416 = vrot.lane.b32.xlu0 %v414, 96
    %v417 = vpop.permute.xlu0 %416
    %v419 = vmul.f32 %v402, %v417
    %421 = vrot.lane.b32.xlu0 %v419, 32
    %v422 = vpop.permute.xlu0 %421
    %v424 = vadd.f32 %v413, %v422
    %426 = vrot.lane.b32.xlu0 %v424, 64
    %v427 = vpop.permute.xlu0 %426
    %429 = vst.msk [vmem:[#allocation2 + $0x8] sm:$0xff] %vm218, %v427
    %v430 = vsel %vm218, %v427, 0
    %432 = vmatprep.subr.mxu0 0.0
    %433 = vmatpush1.msra.mxu0 %v207
    %434 = vmatprep.subr.mxu0 0.0
    %435 = vmatpush1.msra.mxu0 %v208
    %436 = vmatprep.subr.mxu0 0.0
    %437 = vmatpush1.msra.mxu0 %v209
    %438 = vmatprep.subr.mxu0 0.0
    %439 = vmatpush1.msra.mxu0 %v210
    %440 = vmatprep.subr.mxu0 0.0
    %441 = vmatpush1.msra.mxu0 0.0
    %442 = vmatprep.subr.mxu0 0.0
    %443 = vmatpush1.msra.mxu0 0.0
    %444 = vmatprep.subr.mxu0 0.0
    %445 = vmatpush1.msra.mxu0 0.0
    %446 = vmatprep.subr.mxu0 0.0
    %447 = vmatpush1.msra.mxu0 0.0
    %448 = vmatprep.subr.mxu0 0.0
    %449 = vmatpush1.msra.mxu0 0.0
    %450 = vmatprep.subr.mxu0 0.0
    %451 = vmatpush1.msra.mxu0 0.0
    %452 = vmatprep.subr.mxu0 0.0
    %453 = vmatpush1.msra.mxu0 0.0
    %454 = vmatprep.subr.mxu0 0.0
    %455 = vmatpush1.msra.mxu0 0.0
    %456 = vmatprep.subr.mxu0 0.0
    %457 = vmatpush1.msra.mxu0 0.0
    %458 = vmatprep.subr.mxu0 0.0
    %459 = vmatpush1.msra.mxu0 0.0
    %460 = vmatprep.subr.mxu0 0.0
    %461 = vmatpush1.msra.mxu0 0.0
    %462 = vmatprep.subr.mxu0 0.0
    %463 = vmatpush1.msra.mxu0 0.0
    %464 = vmatprep.subr.mxu0 0.0
    %465 = vmatpush1.msra.mxu0 0.0
    %466 = vmatprep.subr.mxu0 0.0
    %467 = vmatpush1.msra.mxu0 0.0
    %468 = vmatprep.subr.mxu0 0.0
    %469 = vmatpush1.msra.mxu0 0.0
    %470 = vmatprep.subr.mxu0 0.0
    %471 = vmatpush1.msra.mxu0 0.0
    %472 = vmatprep.subr.mxu0 0.0
    %473 = vmatpush1.msra.mxu0 0.0
    %474 = vmatprep.subr.mxu0 0.0
    %475 = vmatpush1.msra.mxu0 0.0
    %476 = vmatprep.subr.mxu0 0.0
    %477 = vmatpush1.msra.mxu0 0.0
    %478 = vmatprep.subr.mxu0 0.0
    %479 = vmatpush1.msra.mxu0 0.0
    %480 = vmatprep.subr.mxu0 0.0
    %481 = vmatpush1.msra.mxu0 0.0
    %482 = vmatprep.subr.mxu0 0.0
    %483 = vmatpush1.msra.mxu0 0.0
    %484 = vmatprep.subr.mxu0 0.0
    %485 = vmatpush1.msra.mxu0 0.0
    %486 = vmatprep.subr.mxu0 0.0
    %487 = vmatpush1.msra.mxu0 0.0
    %488 = vmatprep.subr.mxu0 0.0
    %489 = vmatpush1.msra.mxu0 0.0
    %490 = vmatprep.subr.mxu0 0.0
    %491 = vmatpush1.msra.mxu0 0.0
    %492 = vmatprep.subr.mxu0 0.0
    %493 = vmatpush1.msra.mxu0 0.0
    %494 = vmatprep.subr.mxu0 0.0
    %495 = vmatpush1.msra.mxu0 0.0
    %496 = vmatprep.mubr.f32.mxu0 0.0
    %497 = vmatmul.mubr.f32.gmra.mrb[0].mxu0 %v430
    %v498 = vpop.f32.mrb[0].mxu0
    %v499 = vadd.f32 %v216, %v498
    %v500 = vpop.f32.mrb[0].mxu0
    %501 = vdwg.mxu0
    %v502 = vld [vmem:[#allocation3 + $0x10] sm:$0xff]
    %v503 = vadd.f32 %v502, %v499
    %v504 = vmul.f32 %v503, 0.5
    %v505 = vtanh.pop %v504
    %v506 = vadd.f32 %v505, 1.0
    %v507 = vmul.f32 %v506, 0.5
    %509 = vrot.lane.b32.xlu0 %v499, 64
    %v510 = vpop.permute.xlu0 %509
    %v512 = vmul.f32 %v507, %v510
    %514 = vrot.lane.b32.xlu0 %v512, 64
    %v515 = vpop.permute.xlu0 %514
    %v517 = vadd.f32 %v502, %v515
    %v518 = vtanh.pop %v517
    %v519 = vsub.f32 %v424, %v518
    %521 = vrot.lane.b32.xlu0 %v519, 96
    %v522 = vpop.permute.xlu0 %521
    %v524 = vmul.f32 %v507, %v522
    %526 = vrot.lane.b32.xlu0 %v524, 32
    %v527 = vpop.permute.xlu0 %526
    %v529 = vadd.f32 %v518, %v527
    %531 = vrot.lane.b32.xlu0 %v529, 64
    %v532 = vpop.permute.xlu0 %531
    %534 = vst.msk [vmem:[#allocation2 + $0x10] sm:$0xff] %vm218, %v532
    %v535 = vsel %vm218, %v532, 0
    %537 = vmatprep.subr.mxu0 0.0
    %538 = vmatpush1.msra.mxu0 %v207
    %539 = vmatprep.subr.mxu0 0.0
    %540 = vmatpush1.msra.mxu0 %v208
    %541 = vmatprep.subr.mxu0 0.0
    %542 = vmatpush1.msra.mxu0 %v209
    %543 = vmatprep.subr.mxu0 0.0
    %544 = vmatpush1.msra.mxu0 %v210
    %545 = vmatprep.subr.mxu0 0.0
    %546 = vmatpush1.msra.mxu0 0.0
    %547 = vmatprep.subr.mxu0 0.0
    %548 = vmatpush1.msra.mxu0 0.0
    %549 = vmatprep.subr.mxu0 0.0
    %550 = vmatpush1.msra.mxu0 0.0
    %551 = vmatprep.subr.mxu0 0.0
    %552 = vmatpush1.msra.mxu0 0.0
    %553 = vmatprep.subr.mxu0 0.0
    %554 = vmatpush1.msra.mxu0 0.0
    %555 = vmatprep.subr.mxu0 0.0
    %556 = vmatpush1.msra.mxu0 0.0
    %557 = vmatprep.subr.mxu0 0.0
    %558 = vmatpush1.msra.mxu0 0.0
    %559 = vmatprep.subr.mxu0 0.0
    %560 = vmatpush1.msra.mxu0 0.0
    %561 = vmatprep.subr.mxu0 0.0
    %562 = vmatpush1.msra.mxu0 0.0
    %563 = vmatprep.subr.mxu0 0.0
    %564 = vmatpush1.msra.mxu0 0.0
    %565 = vmatprep.subr.mxu0 0.0
    %566 = vmatpush1.msra.mxu0 0.0
    %567 = vmatprep.subr.mxu0 0.0
    %568 = vmatpush1.msra.mxu0 0.0
    %569 = vmatprep.subr.mxu0 0.0
    %570 = vmatpush1.msra.mxu0 0.0
    %571 = vmatprep.subr.mxu0 0.0
    %572 = vmatpush1.msra.mxu0 0.0
    %573 = vmatprep.subr.mxu0 0.0
    %574 = vmatpush1.msra.mxu0 0.0
    %575 = vmatprep.subr.mxu0 0.0
    %576 = vmatpush1.msra.mxu0 0.0
    %577 = vmatprep.subr.mxu0 0.0
    %578 = vmatpush1.msra.mxu0 0.0
    %579 = vmatprep.subr.mxu0 0.0
    %580 = vmatpush1.msra.mxu0 0.0
    %581 = vmatprep.subr.mxu0 0.0
    %582 = vmatpush1.msra.mxu0 0.0
    %583 = vmatprep.subr.mxu0 0.0
    %584 = vmatpush1.msra.mxu0 0.0
    %585 = vmatprep.subr.mxu0 0.0
    %586 = vmatpush1.msra.mxu0 0.0
    %587 = vmatprep.subr.mxu0 0.0
    %588 = vmatpush1.msra.mxu0 0.0
    %589 = vmatprep.subr.mxu0 0.0
    %590 = vmatpush1.msra.mxu0 0.0
    %591 = vmatprep.subr.mxu0 0.0
    %592 = vmatpush1.msra.mxu0 0.0
    %593 = vmatprep.subr.mxu0 0.0
    %594 = vmatpush1.msra.mxu0 0.0
    %595 = vmatprep.subr.mxu0 0.0
    %596 = vmatpush1.msra.mxu0 0.0
    %597 = vmatprep.subr.mxu0 0.0
    %598 = vmatpush1.msra.mxu0 0.0
    %599 = vmatprep.subr.mxu0 0.0
    %600 = vmatpush1.msra.mxu0 0.0
    %601 = vmatprep.mubr.f32.mxu0 0.0
    %602 = vmatmul.mubr.f32.gmra.mrb[0].mxu0 %v535
    %v603 = vpop.f32.mrb[0].mxu0
    %v604 = vadd.f32 %v216, %v603
    %v605 = vpop.f32.mrb[0].mxu0
    %606 = vdwg.mxu0
    %v607 = vld [vmem:[#allocation3 + $0x18] sm:$0xff]
    %v608 = vadd.f32 %v607, %v604
    %v609 = vmul.f32 %v608, 0.5
    %v610 = vtanh.pop %v609
    %v611 = vadd.f32 %v610, 1.0
    %v612 = vmul.f32 %v611, 0.5
    %614 = vrot.lane.b32.xlu0 %v604, 64
    %v615 = vpop.permute.xlu0 %614
    %v617 = vmul.f32 %v612, %v615
    %619 = vrot.lane.b32.xlu0 %v617, 64
    %v620 = vpop.permute.xlu0 %619
    %v622 = vadd.f32 %v607, %v620
    %v623 = vtanh.pop %v622
    %v624 = vsub.f32 %v529, %v623
    %626 = vrot.lane.b32.xlu0 %v624, 96
    %v627 = vpop.permute.xlu0 %626
    %v629 = vmul.f32 %v612, %v627
    %631 = vrot.lane.b32.xlu0 %v629, 32
    %v632 = vpop.permute.xlu0 %631
    %v634 = vadd.f32 %v623, %v632
    %636 = vrot.lane.b32.xlu0 %v634, 64
    %v637 = vpop.permute.xlu0 %636
    %639 = vst.msk [vmem:[#allocation2 + $0x18] sm:$0xff] %vm218, %v637
    %v640 = vsel %vm218, %v637, 0
    %642 = vmatprep.subr.mxu0 0.0
    %643 = vmatpush1.msra.mxu0 %v207
    %644 = vmatprep.subr.mxu0 0.0
    %645 = vmatpush1.msra.mxu0 %v208
    %646 = vmatprep.subr.mxu0 0.0
    %647 = vmatpush1.msra.mxu0 %v209
    %648 = vmatprep.subr.mxu0 0.0
    %649 = vmatpush1.msra.mxu0 %v210
    %650 = vmatprep.subr.mxu0 0.0
    %651 = vmatpush1.msra.mxu0 0.0
    %652 = vmatprep.subr.mxu0 0.0
    %653 = vmatpush1.msra.mxu0 0.0
    %654 = vmatprep.subr.mxu0 0.0
    %655 = vmatpush1.msra.mxu0 0.0
    %656 = vmatprep.subr.mxu0 0.0
    %657 = vmatpush1.msra.mxu0 0.0
    %658 = vmatprep.subr.mxu0 0.0
    %659 = vmatpush1.msra.mxu0 0.0
    %660 = vmatprep.subr.mxu0 0.0
    %661 = vmatpush1.msra.mxu0 0.0
    %662 = vmatprep.subr.mxu0 0.0
    %663 = vmatpush1.msra.mxu0 0.0
    %664 = vmatprep.subr.mxu0 0.0
    %665 = vmatpush1.msra.mxu0 0.0
    %666 = vmatprep.subr.mxu0 0.0
    %667 = vmatpush1.msra.mxu0 0.0
    %668 = vmatprep.subr.mxu0 0.0
    %669 = vmatpush1.msra.mxu0 0.0
    %670 = vmatprep.subr.mxu0 0.0
    %671 = vmatpush1.msra.mxu0 0.0
    %672 = vmatprep.subr.mxu0 0.0
    %673 = vmatpush1.msra.mxu0 0.0
    %674 = vmatprep.subr.mxu0 0.0
    %675 = vmatpush1.msra.mxu0 0.0
    %676 = vmatprep.subr.mxu0 0.0
    %677 = vmatpush1.msra.mxu0 0.0
    %678 = vmatprep.subr.mxu0 0.0
    %679 = vmatpush1.msra.mxu0 0.0
    %680 = vmatprep.subr.mxu0 0.0
    %681 = vmatpush1.msra.mxu0 0.0
    %682 = vmatprep.subr.mxu0 0.0
    %683 = vmatpush1.msra.mxu0 0.0
    %684 = vmatprep.subr.mxu0 0.0
    %685 = vmatpush1.msra.mxu0 0.0
    %686 = vmatprep.subr.mxu0 0.0
    %687 = vmatpush1.msra.mxu0 0.0
    %688 = vmatprep.subr.mxu0 0.0
    %689 = vmatpush1.msra.mxu0 0.0
    %690 = vmatprep.subr.mxu0 0.0
    %691 = vmatpush1.msra.mxu0 0.0
    %692 = vmatprep.subr.mxu0 0.0
    %693 = vmatpush1.msra.mxu0 0.0
    %694 = vmatprep.subr.mxu0 0.0
    %695 = vmatpush1.msra.mxu0 0.0
    %696 = vmatprep.subr.mxu0 0.0
    %697 = vmatpush1.msra.mxu0 0.0
    %698 = vmatprep.subr.mxu0 0.0
    %699 = vmatpush1.msra.mxu0 0.0
    %700 = vmatprep.subr.mxu0 0.0
    %701 = vmatpush1.msra.mxu0 0.0
    %702 = vmatprep.subr.mxu0 0.0
    %703 = vmatpush1.msra.mxu0 0.0
    %704 = vmatprep.subr.mxu0 0.0
    %705 = vmatpush1.msra.mxu0 0.0
    %706 = vmatprep.mubr.f32.mxu0 0.0
    %707 = vmatmul.mubr.f32.gmra.mrb[0].mxu0 %v640
    %v708 = vpop.f32.mrb[0].mxu0
    %v709 = vadd.f32 %v216, %v708
    %v710 = vpop.f32.mrb[0].mxu0
    %711 = vdwg.mxu0
    %v712 = vld [vmem:[#allocation3 + $0x20] sm:$0xff]
    %v713 = vadd.f32 %v712, %v709
    %v714 = vmul.f32 %v713, 0.5
    %v715 = vtanh.pop %v714
    %v716 = vadd.f32 %v715, 1.0
    %v717 = vmul.f32 %v716, 0.5
    %719 = vrot.lane.b32.xlu0 %v709, 64
    %v720 = vpop.permute.xlu0 %719
    %v722 = vmul.f32 %v717, %v720
    %724 = vrot.lane.b32.xlu0 %v722, 64
    %v725 = vpop.permute.xlu0 %724
    %v727 = vadd.f32 %v712, %v725
    %v728 = vtanh.pop %v727
    %v729 = vsub.f32 %v634, %v728
    %731 = vrot.lane.b32.xlu0 %v729, 96
    %v732 = vpop.permute.xlu0 %731
    %v734 = vmul.f32 %v717, %v732
    %736 = vrot.lane.b32.xlu0 %v734, 32
    %v737 = vpop.permute.xlu0 %736
    %v739 = vadd.f32 %v728, %v737
    %741 = vrot.lane.b32.xlu0 %v739, 64
    %v742 = vpop.permute.xlu0 %741
    %744 = vst.msk [vmem:[#allocation2 + $0x20] sm:$0xff] %vm218, %v742
    %v745 = vsel %vm218, %v742, 0
    %747 = vmatprep.subr.mxu0 0.0
    %748 = vmatpush1.msra.mxu0 %v207
    %749 = vmatprep.subr.mxu0 0.0
    %750 = vmatpush1.msra.mxu0 %v208
    %751 = vmatprep.subr.mxu0 0.0
    %752 = vmatpush1.msra.mxu0 %v209
    %753 = vmatprep.subr.mxu0 0.0
    %754 = vmatpush1.msra.mxu0 %v210
    %755 = vmatprep.subr.mxu0 0.0
    %756 = vmatpush1.msra.mxu0 0.0
    %757 = vmatprep.subr.mxu0 0.0
    %758 = vmatpush1.msra.mxu0 0.0
    %759 = vmatprep.subr.mxu0 0.0
    %760 = vmatpush1.msra.mxu0 0.0
    %761 = vmatprep.subr.mxu0 0.0
    %762 = vmatpush1.msra.mxu0 0.0
    %763 = vmatprep.subr.mxu0 0.0
    %764 = vmatpush1.msra.mxu0 0.0
    %765 = vmatprep.subr.mxu0 0.0
    %766 = vmatpush1.msra.mxu0 0.0
    %767 = vmatprep.subr.mxu0 0.0
    %768 = vmatpush1.msra.mxu0 0.0
    %769 = vmatprep.subr.mxu0 0.0
    %770 = vmatpush1.msra.mxu0 0.0
    %771 = vmatprep.subr.mxu0 0.0
    %772 = vmatpush1.msra.mxu0 0.0
    %773 = vmatprep.subr.mxu0 0.0
    %774 = vmatpush1.msra.mxu0 0.0
    %775 = vmatprep.subr.mxu0 0.0
    %776 = vmatpush1.msra.mxu0 0.0
    %777 = vmatprep.subr.mxu0 0.0
    %778 = vmatpush1.msra.mxu0 0.0
    %779 = vmatprep.subr.mxu0 0.0
    %780 = vmatpush1.msra.mxu0 0.0
    %781 = vmatprep.subr.mxu0 0.0
    %782 = vmatpush1.msra.mxu0 0.0
    %783 = vmatprep.subr.mxu0 0.0
    %784 = vmatpush1.msra.mxu0 0.0
    %785 = vmatprep.subr.mxu0 0.0
    %786 = vmatpush1.msra.mxu0 0.0
    %787 = vmatprep.subr.mxu0 0.0
    %788 = vmatpush1.msra.mxu0 0.0
    %789 = vmatprep.subr.mxu0 0.0
    %790 = vmatpush1.msra.mxu0 0.0
    %791 = vmatprep.subr.mxu0 0.0
    %792 = vmatpush1.msra.mxu0 0.0
    %793 = vmatprep.subr.mxu0 0.0
    %794 = vmatpush1.msra.mxu0 0.0
    %795 = vmatprep.subr.mxu0 0.0
    %796 = vmatpush1.msra.mxu0 0.0
    %797 = vmatprep.subr.mxu0 0.0
    %798 = vmatpush1.msra.mxu0 0.0
    %799 = vmatprep.subr.mxu0 0.0
    %800 = vmatpush1.msra.mxu0 0.0
    %801 = vmatprep.subr.mxu0 0.0
    %802 = vmatpush1.msra.mxu0 0.0
    %803 = vmatprep.subr.mxu0 0.0
    %804 = vmatpush1.msra.mxu0 0.0
    %805 = vmatprep.subr.mxu0 0.0
    %806 = vmatpush1.msra.mxu0 0.0
    %807 = vmatprep.subr.mxu0 0.0
    %808 = vmatpush1.msra.mxu0 0.0
    %809 = vmatprep.subr.mxu0 0.0
    %810 = vmatpush1.msra.mxu0 0.0
    %811 = vmatprep.mubr.f32.mxu0 0.0
    %812 = vmatmul.mubr.f32.gmra.mrb[0].mxu0 %v745
    %v813 = vpop.f32.mrb[0].mxu0
    %v814 = vadd.f32 %v216, %v813
    %v815 = vpop.f32.mrb[0].mxu0
    %816 = vdwg.mxu0
    %v817 = vld [vmem:[#allocation3 + $0x28] sm:$0xff]
    %v818 = vadd.f32 %v817, %v814
    %v819 = vmul.f32 %v818, 0.5
    %v820 = vtanh.pop %v819
    %v821 = vadd.f32 %v820, 1.0
    %v822 = vmul.f32 %v821, 0.5
    %824 = vrot.lane.b32.xlu0 %v814, 64
    %v825 = vpop.permute.xlu0 %824
    %v827 = vmul.f32 %v822, %v825
    %829 = vrot.lane.b32.xlu0 %v827, 64
    %v830 = vpop.permute.xlu0 %829
    %v832 = vadd.f32 %v817, %v830
    %v833 = vtanh.pop %v832
    %v834 = vsub.f32 %v739, %v833
    %836 = vrot.lane.b32.xlu0 %v834, 96
    %v837 = vpop.permute.xlu0 %836
    %v839 = vmul.f32 %v822, %v837
    %841 = vrot.lane.b32.xlu0 %v839, 32
    %v842 = vpop.permute.xlu0 %841
    %v844 = vadd.f32 %v833, %v842
    %846 = vrot.lane.b32.xlu0 %v844, 64
    %v847 = vpop.permute.xlu0 %846
    %849 = vst.msk [vmem:[#allocation2 + $0x28] sm:$0xff] %vm218, %v847
    %v850 = vsel %vm218, %v847, 0
    %852 = vmatprep.subr.mxu0 0.0
    %853 = vmatpush1.msra.mxu0 %v207
    %854 = vmatprep.subr.mxu0 0.0
    %855 = vmatpush1.msra.mxu0 %v208
    %856 = vmatprep.subr.mxu0 0.0
    %857 = vmatpush1.msra.mxu0 %v209
    %858 = vmatprep.subr.mxu0 0.0
    %859 = vmatpush1.msra.mxu0 %v210
    %860 = vmatprep.subr.mxu0 0.0
    %861 = vmatpush1.msra.mxu0 0.0
    %862 = vmatprep.subr.mxu0 0.0
    %863 = vmatpush1.msra.mxu0 0.0
    %864 = vmatprep.subr.mxu0 0.0
    %865 = vmatpush1.msra.mxu0 0.0
    %866 = vmatprep.subr.mxu0 0.0
    %867 = vmatpush1.msra.mxu0 0.0
    %868 = vmatprep.subr.mxu0 0.0
    %869 = vmatpush1.msra.mxu0 0.0
    %870 = vmatprep.subr.mxu0 0.0
    %871 = vmatpush1.msra.mxu0 0.0
    %872 = vmatprep.subr.mxu0 0.0
    %873 = vmatpush1.msra.mxu0 0.0
    %874 = vmatprep.subr.mxu0 0.0
    %875 = vmatpush1.msra.mxu0 0.0
    %876 = vmatprep.subr.mxu0 0.0
    %877 = vmatpush1.msra.mxu0 0.0
    %878 = vmatprep.subr.mxu0 0.0
    %879 = vmatpush1.msra.mxu0 0.0
    %880 = vmatprep.subr.mxu0 0.0
    %881 = vmatpush1.msra.mxu0 0.0
    %882 = vmatprep.subr.mxu0 0.0
    %883 = vmatpush1.msra.mxu0 0.0
    %884 = vmatprep.subr.mxu0 0.0
    %885 = vmatpush1.msra.mxu0 0.0
    %886 = vmatprep.subr.mxu0 0.0
    %887 = vmatpush1.msra.mxu0 0.0
    %888 = vmatprep.subr.mxu0 0.0
    %889 = vmatpush1.msra.mxu0 0.0
    %890 = vmatprep.subr.mxu0 0.0
    %891 = vmatpush1.msra.mxu0 0.0
    %892 = vmatprep.subr.mxu0 0.0
    %893 = vmatpush1.msra.mxu0 0.0
    %894 = vmatprep.subr.mxu0 0.0
    %895 = vmatpush1.msra.mxu0 0.0
    %896 = vmatprep.subr.mxu0 0.0
    %897 = vmatpush1.msra.mxu0 0.0
    %898 = vmatprep.subr.mxu0 0.0
    %899 = vmatpush1.msra.mxu0 0.0
    %900 = vmatprep.subr.mxu0 0.0
    %901 = vmatpush1.msra.mxu0 0.0
    %902 = vmatprep.subr.mxu0 0.0
    %903 = vmatpush1.msra.mxu0 0.0
    %904 = vmatprep.subr.mxu0 0.0
    %905 = vmatpush1.msra.mxu0 0.0
    %906 = vmatprep.subr.mxu0 0.0
    %907 = vmatpush1.msra.mxu0 0.0
    %908 = vmatprep.subr.mxu0 0.0
    %909 = vmatpush1.msra.mxu0 0.0
    %910 = vmatprep.subr.mxu0 0.0
    %911 = vmatpush1.msra.mxu0 0.0
    %912 = vmatprep.subr.mxu0 0.0
    %913 = vmatpush1.msra.mxu0 0.0
    %914 = vmatprep.subr.mxu0 0.0
    %915 = vmatpush1.msra.mxu0 0.0
    %916 = vmatprep.mubr.f32.mxu0 0.0
    %917 = vmatmul.mubr.f32.gmra.mrb[0].mxu0 %v850
    %v918 = vpop.f32.mrb[0].mxu0
    %v919 = vadd.f32 %v216, %v918
    %v920 = vpop.f32.mrb[0].mxu0
    %921 = vdwg.mxu0
    %v922 = vld [vmem:[#allocation3 + $0x30] sm:$0xff]
    %v923 = vadd.f32 %v922, %v919
    %v924 = vmul.f32 %v923, 0.5
    %v925 = vtanh.pop %v924
    %v926 = vadd.f32 %v925, 1.0
    %v927 = vmul.f32 %v926, 0.5
    %929 = vrot.lane.b32.xlu0 %v919, 64
    %v930 = vpop.permute.xlu0 %929
    %v932 = vmul.f32 %v927, %v930
    %934 = vrot.lane.b32.xlu0 %v932, 64
    %v935 = vpop.permute.xlu0 %934
    %v937 = vadd.f32 %v922, %v935
    %v938 = vtanh.pop %v937
    %v939 = vsub.f32 %v844, %v938
    %941 = vrot.lane.b32.xlu0 %v939, 96
    %v942 = vpop.permute.xlu0 %941
    %v944 = vmul.f32 %v927, %v942
    %946 = vrot.lane.b32.xlu0 %v944, 32
    %v947 = vpop.permute.xlu0 %946
    %v949 = vadd.f32 %v938, %v947
    %951 = vrot.lane.b32.xlu0 %v949, 64
    %v952 = vpop.permute.xlu0 %951
    %954 = vst.msk [vmem:[#allocation2 + $0x30] sm:$0xff] %vm218, %v952
    %v955 = vsel %vm218, %v952, 0
    %957 = vmatprep.subr.mxu0 0.0
    %958 = vmatpush1.msra.mxu0 %v207
    %959 = vmatprep.subr.mxu0 0.0
    %960 = vmatpush1.msra.mxu0 %v208
    %961 = vmatprep.subr.mxu0 0.0
    %962 = vmatpush1.msra.mxu0 %v209
    %963 = vmatprep.subr.mxu0 0.0
    %964 = vmatpush1.msra.mxu0 %v210
    %965 = vmatprep.subr.mxu0 0.0
    %966 = vmatpush1.msra.mxu0 0.0
    %967 = vmatprep.subr.mxu0 0.0
    %968 = vmatpush1.msra.mxu0 0.0
    %969 = vmatprep.subr.mxu0 0.0
    %970 = vmatpush1.msra.mxu0 0.0
    %971 = vmatprep.subr.mxu0 0.0
    %972 = vmatpush1.msra.mxu0 0.0
    %973 = vmatprep.subr.mxu0 0.0
    %974 = vmatpush1.msra.mxu0 0.0
    %975 = vmatprep.subr.mxu0 0.0
    %976 = vmatpush1.msra.mxu0 0.0
    %977 = vmatprep.subr.mxu0 0.0
    %978 = vmatpush1.msra.mxu0 0.0
    %979 = vmatprep.subr.mxu0 0.0
    %980 = vmatpush1.msra.mxu0 0.0
    %981 = vmatprep.subr.mxu0 0.0
    %982 = vmatpush1.msra.mxu0 0.0
    %983 = vmatprep.subr.mxu0 0.0
    %984 = vmatpush1.msra.mxu0 0.0
    %985 = vmatprep.subr.mxu0 0.0
    %986 = vmatpush1.msra.mxu0 0.0
    %987 = vmatprep.subr.mxu0 0.0
    %988 = vmatpush1.msra.mxu0 0.0
    %989 = vmatprep.subr.mxu0 0.0
    %990 = vmatpush1.msra.mxu0 0.0
    %991 = vmatprep.subr.mxu0 0.0
    %992 = vmatpush1.msra.mxu0 0.0
    %993 = vmatprep.subr.mxu0 0.0
    %994 = vmatpush1.msra.mxu0 0.0
    %995 = vmatprep.subr.mxu0 0.0
    %996 = vmatpush1.msra.mxu0 0.0
    %997 = vmatprep.subr.mxu0 0.0
    %998 = vmatpush1.msra.mxu0 0.0
    %999 = vmatprep.subr.mxu0 0.0
    %1000 = vmatpush1.msra.mxu0 0.0
    %1001 = vmatprep.subr.mxu0 0.0
    %1002 = vmatpush1.msra.mxu0 0.0
    %1003 = vmatprep.subr.mxu0 0.0
    %1004 = vmatpush1.msra.mxu0 0.0
    %1005 = vmatprep.subr.mxu0 0.0
    %1006 = vmatpush1.msra.mxu0 0.0
    %1007 = vmatprep.subr.mxu0 0.0
    %1008 = vmatpush1.msra.mxu0 0.0
    %1009 = vmatprep.subr.mxu0 0.0
    %1010 = vmatpush1.msra.mxu0 0.0
    %1011 = vmatprep.subr.mxu0 0.0
    %1012 = vmatpush1.msra.mxu0 0.0
    %1013 = vmatprep.subr.mxu0 0.0
    %1014 = vmatpush1.msra.mxu0 0.0
    %1015 = vmatprep.subr.mxu0 0.0
    %1016 = vmatpush1.msra.mxu0 0.0
    %1017 = vmatprep.subr.mxu0 0.0
    %1018 = vmatpush1.msra.mxu0 0.0
    %1019 = vmatprep.subr.mxu0 0.0
    %1020 = vmatpush1.msra.mxu0 0.0
    %1021 = vmatprep.mubr.f32.mxu0 0.0
    %1022 = vmatmul.mubr.f32.gmra.mrb[0].mxu0 %v955
    %v1023 = vpop.f32.mrb[0].mxu0
    %v1024 = vadd.f32 %v216, %v1023
    %v1025 = vpop.f32.mrb[0].mxu0
    %1026 = vdwg.mxu0
    %v1027 = vld [vmem:[#allocation3 + $0x38] sm:$0xff]
    %v1028 = vadd.f32 %v1027, %v1024
    %v1029 = vmul.f32 %v1028, 0.5
    %v1030 = vtanh.pop %v1029
    %v1031 = vadd.f32 %v1030, 1.0
    %v1032 = vmul.f32 %v1031, 0.5
    %1034 = vrot.lane.b32.xlu0 %v1024, 64
    %v1035 = vpop.permute.xlu0 %1034
    %v1037 = vmul.f32 %v1032, %v1035
    %1039 = vrot.lane.b32.xlu0 %v1037, 64
    %v1040 = vpop.permute.xlu0 %1039
    %v1042 = vadd.f32 %v1027, %v1040
    %v1043 = vtanh.pop %v1042
    %v1044 = vsub.f32 %v949, %v1043
    %1046 = vrot.lane.b32.xlu0 %v1044, 96
    %v1047 = vpop.permute.xlu0 %1046
    %v1049 = vmul.f32 %v1032, %v1047
    %1051 = vrot.lane.b32.xlu0 %v1049, 32
    %v1052 = vpop.permute.xlu0 %1051
    %v1054 = vadd.f32 %v1043, %v1052
    %1056 = vrot.lane.b32.xlu0 %v1054, 64
    %v1057 = vpop.permute.xlu0 %1056
    %1059 = vst.msk [vmem:[#allocation2 + $0x38] sm:$0xff] %vm218, %v1057
    %v1060 = vld [vmem:[#allocation2] sm:$0xff]
    %v1061 = vld [vmem:[#allocation2 + $0x8] sm:$0xff]
    %v1062 = vld [vmem:[#allocation2 + $0x10] sm:$0xff]
    %v1063 = vld [vmem:[#allocation2 + $0x18] sm:$0xff]
    %v1064 = vld [vmem:[#allocation2 + $0x20] sm:$0xff]
    %v1065 = vld [vmem:[#allocation2 + $0x28] sm:$0xff]
    %v1066 = vld [vmem:[#allocation2 + $0x30] sm:$0xff]
    %v1067 = vld [vmem:[#allocation2 + $0x38] sm:$0xff]
    %v1068 = vld [vmem:[%s5] sm:$0xff]
    %v1069 = vld [vmem:[%s5 + $0x8] sm:$0xff]
    %v1070 = vld [vmem:[%s5 + $0x10] sm:$0xff]
    %v1071 = vld [vmem:[%s5 + $0x18] sm:$0xff]
    %v1072 = vld [vmem:[%s7] sm:$0x1]
    %v1074 = vlaneseq
    %v1075 = vshrl.u32 %v1074, 7
    %v1076 = vsub.s32 0, %v1075
    %v1077 = vrot.slane %v1072, %v1076
    %v1080 = vsel %vm218, %v1060, 0
    %v1083 = vsel %vm218, %v1061, 0
    %v1086 = vsel %vm218, %v1062, 0
    %v1089 = vsel %vm218, %v1063, 0
    %v1092 = vsel %vm218, %v1064, 0
    %v1095 = vsel %vm218, %v1065, 0
    %v1098 = vsel %vm218, %v1066, 0
    %v1101 = vsel %vm218, %v1067, 0
    %1103 = vmatprep.subr.mxu0 0.0
    %1104 = vmatpush1.msra.mxu0 %v1068
    %1105 = vmatprep.subr.mxu0 0.0
    %1106 = vmatpush1.msra.mxu0 %v1069
    %1107 = vmatprep.subr.mxu0 0.0
    %1108 = vmatpush1.msra.mxu0 %v1070
    %1109 = vmatprep.subr.mxu0 0.0
    %1110 = vmatpush1.msra.mxu0 %v1071
    %1111 = vmatprep.subr.mxu0 0.0
    %1112 = vmatpush1.msra.mxu0 0.0
    %1113 = vmatprep.subr.mxu0 0.0
    %1114 = vmatpush1.msra.mxu0 0.0
    %1115 = vmatprep.subr.mxu0 0.0
    %1116 = vmatpush1.msra.mxu0 0.0
    %1117 = vmatprep.subr.mxu0 0.0
    %1118 = vmatpush1.msra.mxu0 0.0
    %1119 = vmatprep.subr.mxu0 0.0
    %1120 = vmatpush1.msra.mxu0 0.0
    %1121 = vmatprep.subr.mxu0 0.0
    %1122 = vmatpush1.msra.mxu0 0.0
    %1123 = vmatprep.subr.mxu0 0.0
    %1124 = vmatpush1.msra.mxu0 0.0
    %1125 = vmatprep.subr.mxu0 0.0
    %1126 = vmatpush1.msra.mxu0 0.0
    %1127 = vmatprep.subr.mxu0 0.0
    %1128 = vmatpush1.msra.mxu0 0.0
    %1129 = vmatprep.subr.mxu0 0.0
    %1130 = vmatpush1.msra.mxu0 0.0
    %1131 = vmatprep.subr.mxu0 0.0
    %1132 = vmatpush1.msra.mxu0 0.0
    %1133 = vmatprep.subr.mxu0 0.0
    %1134 = vmatpush1.msra.mxu0 0.0
    %1135 = vmatprep.subr.mxu0 0.0
    %1136 = vmatpush1.msra.mxu0 0.0
    %1137 = vmatprep.subr.mxu0 0.0
    %1138 = vmatpush1.msra.mxu0 0.0
    %1139 = vmatprep.subr.mxu0 0.0
    %1140 = vmatpush1.msra.mxu0 0.0
    %1141 = vmatprep.subr.mxu0 0.0
    %1142 = vmatpush1.msra.mxu0 0.0
    %1143 = vmatprep.subr.mxu0 0.0
    %1144 = vmatpush1.msra.mxu0 0.0
    %1145 = vmatprep.subr.mxu0 0.0
    %1146 = vmatpush1.msra.mxu0 0.0
    %1147 = vmatprep.subr.mxu0 0.0
    %1148 = vmatpush1.msra.mxu0 0.0
    %1149 = vmatprep.subr.mxu0 0.0
    %1150 = vmatpush1.msra.mxu0 0.0
    %1151 = vmatprep.subr.mxu0 0.0
    %1152 = vmatpush1.msra.mxu0 0.0
    %1153 = vmatprep.subr.mxu0 0.0
    %1154 = vmatpush1.msra.mxu0 0.0
    %1155 = vmatprep.subr.mxu0 0.0
    %1156 = vmatpush1.msra.mxu0 0.0
    %1157 = vmatprep.subr.mxu0 0.0
    %1158 = vmatpush1.msra.mxu0 0.0
    %1159 = vmatprep.subr.mxu0 0.0
    %1160 = vmatpush1.msra.mxu0 0.0
    %1161 = vmatprep.subr.mxu0 0.0
    %1162 = vmatpush1.msra.mxu0 0.0
    %1163 = vmatprep.subr.mxu0 0.0
    %1164 = vmatpush1.msra.mxu0 0.0
    %1165 = vmatprep.subr.mxu0 0.0
    %1166 = vmatpush1.msra.mxu0 0.0
    %1167 = vmatprep.mubr.f32.mxu0 0.0
    %1168 = vmatmul.mubr.f32.gmra.mrb[0].mxu0 %v1080
    %v1169 = vpop.f32.mrb[0].mxu0
    %v1170 = vadd.f32 %v1077, %v1169
    %v1171 = vpop.f32.mrb[0].mxu0
    %1172 = vmatprep.mubr.f32.mxu0 0.0
    %1173 = vmatmul.mubr.f32.gmra.mrb[0].mxu0 %v1083
    %v1174 = vpop.f32.mrb[0].mxu0
    %v1175 = vadd.f32 %v1077, %v1174
    %v1176 = vpop.f32.mrb[0].mxu0
    %1177 = vmatprep.mubr.f32.mxu0 0.0
    %1178 = vmatmul.mubr.f32.gmra.mrb[0].mxu0 %v1086
    %v1179 = vpop.f32.mrb[0].mxu0
    %v1180 = vadd.f32 %v1077, %v1179
    %v1181 = vpop.f32.mrb[0].mxu0
    %1182 = vmatprep.mubr.f32.mxu0 0.0
    %1183 = vmatmul.mubr.f32.gmra.mrb[0].mxu0 %v1089
    %v1184 = vpop.f32.mrb[0].mxu0
    %v1185 = vadd.f32 %v1077, %v1184
    %v1186 = vpop.f32.mrb[0].mxu0
    %1187 = vmatprep.mubr.f32.mxu0 0.0
    %1188 = vmatmul.mubr.f32.gmra.mrb[0].mxu0 %v1092
    %v1189 = vpop.f32.mrb[0].mxu0
    %v1190 = vadd.f32 %v1077, %v1189
    %v1191 = vpop.f32.mrb[0].mxu0
    %1192 = vmatprep.mubr.f32.mxu0 0.0
    %1193 = vmatmul.mubr.f32.gmra.mrb[0].mxu0 %v1095
    %v1194 = vpop.f32.mrb[0].mxu0
    %v1195 = vadd.f32 %v1077, %v1194
    %v1196 = vpop.f32.mrb[0].mxu0
    %1197 = vmatprep.mubr.f32.mxu0 0.0
    %1198 = vmatmul.mubr.f32.gmra.mrb[0].mxu0 %v1098
    %v1199 = vpop.f32.mrb[0].mxu0
    %v1200 = vadd.f32 %v1077, %v1199
    %v1201 = vpop.f32.mrb[0].mxu0
    %1202 = vmatprep.mubr.f32.mxu0 0.0
    %1203 = vmatmul.mubr.f32.gmra.mrb[0].mxu0 %v1101
    %v1204 = vpop.f32.mrb[0].mxu0
    %v1205 = vadd.f32 %v1077, %v1204
    %v1206 = vpop.f32.mrb[0].mxu0
    %1207 = vdwg.mxu0
    %1208 = vst [vmem:[#allocation3] sm:$0xff] %v1170
    %1209 = vst [vmem:[#allocation3 + $0x8] sm:$0xff] %v1175
    %1210 = vst [vmem:[#allocation3 + $0x10] sm:$0xff] %v1180
    %1211 = vst [vmem:[#allocation3 + $0x18] sm:$0xff] %v1185
    %1212 = vst [vmem:[#allocation3 + $0x20] sm:$0xff] %v1190
    %1213 = vst [vmem:[#allocation3 + $0x28] sm:$0xff] %v1195
    %1214 = vst [vmem:[#allocation3 + $0x30] sm:$0xff] %v1200
    %1215 = vst [vmem:[#allocation3 + $0x38] sm:$0xff] %v1205
    %v1216 = vld [vmem:[%s6] sm:$0xff]
    %v1217 = vld [vmem:[%s6 + $0x8] sm:$0xff]
    %v1218 = vld [vmem:[%s6 + $0x10] sm:$0xff]
    %v1219 = vld [vmem:[%s6 + $0x18] sm:$0xff]
    %v1220 = vld [vmem:[%s8] sm:$0x1]
    %v1222 = vlaneseq
    %v1223 = vshrl.u32 %v1222, 7
    %v1224 = vsub.s32 0, %v1223
    %v1225 = vrot.slane %v1220, %v1224
    %1227 = vmatprep.subr.mxu0 0.0
    %1228 = vmatpush1.msra.mxu0 %v1216
    %1229 = vmatprep.subr.mxu0 0.0
    %1230 = vmatpush1.msra.mxu0 %v1217
    %1231 = vmatprep.subr.mxu0 0.0
    %1232 = vmatpush1.msra.mxu0 %v1218
    %1233 = vmatprep.subr.mxu0 0.0
    %1234 = vmatpush1.msra.mxu0 %v1219
    %1235 = vmatprep.subr.mxu0 0.0
    %1236 = vmatpush1.msra.mxu0 0.0
    %1237 = vmatprep.subr.mxu0 0.0
    %1238 = vmatpush1.msra.mxu0 0.0
    %1239 = vmatprep.subr.mxu0 0.0
    %1240 = vmatpush1.msra.mxu0 0.0
    %1241 = vmatprep.subr.mxu0 0.0
    %1242 = vmatpush1.msra.mxu0 0.0
    %1243 = vmatprep.subr.mxu0 0.0
    %1244 = vmatpush1.msra.mxu0 0.0
    %1245 = vmatprep.subr.mxu0 0.0
    %1246 = vmatpush1.msra.mxu0 0.0
    %1247 = vmatprep.subr.mxu0 0.0
    %1248 = vmatpush1.msra.mxu0 0.0
    %1249 = vmatprep.subr.mxu0 0.0
    %1250 = vmatpush1.msra.mxu0 0.0
    %1251 = vmatprep.subr.mxu0 0.0
    %1252 = vmatpush1.msra.mxu0 0.0
    %1253 = vmatprep.subr.mxu0 0.0
    %1254 = vmatpush1.msra.mxu0 0.0
    %1255 = vmatprep.subr.mxu0 0.0
    %1256 = vmatpush1.msra.mxu0 0.0
    %1257 = vmatprep.subr.mxu0 0.0
    %1258 = vmatpush1.msra.mxu0 0.0
    %1259 = vmatprep.subr.mxu0 0.0
    %1260 = vmatpush1.msra.mxu0 0.0
    %1261 = vmatprep.subr.mxu0 0.0
    %1262 = vmatpush1.msra.mxu0 0.0
    %1263 = vmatprep.subr.mxu0 0.0
    %1264 = vmatpush1.msra.mxu0 0.0
    %1265 = vmatprep.subr.mxu0 0.0
    %1266 = vmatpush1.msra.mxu0 0.0
    %1267 = vmatprep.subr.mxu0 0.0
    %1268 = vmatpush1.msra.mxu0 0.0
    %1269 = vmatprep.subr.mxu0 0.0
    %1270 = vmatpush1.msra.mxu0 0.0
    %1271 = vmatprep.subr.mxu0 0.0
    %1272 = vmatpush1.msra.mxu0 0.0
    %1273 = vmatprep.subr.mxu0 0.0
    %1274 = vmatpush1.msra.mxu0 0.0
    %1275 = vmatprep.subr.mxu0 0.0
    %1276 = vmatpush1.msra.mxu0 0.0
    %1277 = vmatprep.subr.mxu0 0.0
    %1278 = vmatpush1.msra.mxu0 0.0
    %1279 = vmatprep.subr.mxu0 0.0
    %1280 = vmatpush1.msra.mxu0 0.0
    %1281 = vmatprep.subr.mxu0 0.0
    %1282 = vmatpush1.msra.mxu0 0.0
    %1283 = vmatprep.subr.mxu0 0.0
    %1284 = vmatpush1.msra.mxu0 0.0
    %1285 = vmatprep.subr.mxu0 0.0
    %1286 = vmatpush1.msra.mxu0 0.0
    %1287 = vmatprep.subr.mxu0 0.0
    %1288 = vmatpush1.msra.mxu0 0.0
    %1289 = vmatprep.subr.mxu0 0.0
    %1290 = vmatpush1.msra.mxu0 0.0
    %1291 = vmatprep.mubr.f32.mxu0 0.0
    %1292 = vmatmul.mubr.f32.gmra.mrb[0].mxu0 %v220
    %v1293 = vpop.f32.mrb[0].mxu0
    %v1294 = vadd.f32 %v1225, %v1293
    %v1295 = vpop.f32.mrb[0].mxu0
    %1296 = vdwg.mxu0
    %v1297 = vld [vmem:[#allocation3] sm:$0xff]
    %v1298 = vadd.f32 %v1297, %v1294
    %v1299 = vmul.f32 %v1298, 0.5
    %v1300 = vtanh.pop %v1299
    %v1301 = vadd.f32 %v1300, 1.0
    %v1302 = vmul.f32 %v1301, 0.5
    %1304 = vrot.lane.b32.xlu0 %v1294, 64
    %v1305 = vpop.permute.xlu0 %1304
    %v1307 = vmul.f32 %v1302, %v1305
    %1309 = vrot.lane.b32.xlu0 %v1307, 64
    %v1310 = vpop.permute.xlu0 %1309
    %v1312 = vadd.f32 %v1297, %v1310
    %v1313 = vtanh.pop %v1312
    %v1314 = vsub.f32 0.0, %v1313
    %1316 = vrot.lane.b32.xlu0 %v1314, 96
    %v1317 = vpop.permute.xlu0 %1316
    %v1319 = vmul.f32 %v1302, %v1317
    %1321 = vrot.lane.b32.xlu0 %v1319, 32
    %v1322 = vpop.permute.xlu0 %1321
    %v1324 = vadd.f32 %v1313, %v1322
    %1326 = vrot.lane.b32.xlu0 %v1324, 64
    %v1327 = vpop.permute.xlu0 %1326
    %v1328 = vsel %vm218, %v1327, 0
    %1330 = vmatprep.subr.mxu0 0.0
    %1331 = vmatpush1.msra.mxu0 %v1216
    %1332 = vmatprep.subr.mxu0 0.0
    %1333 = vmatpush1.msra.mxu0 %v1217
    %1334 = vmatprep.subr.mxu0 0.0
    %1335 = vmatpush1.msra.mxu0 %v1218
    %1336 = vmatprep.subr.mxu0 0.0
    %1337 = vmatpush1.msra.mxu0 %v1219
    %1338 = vmatprep.subr.mxu0 0.0
    %1339 = vmatpush1.msra.mxu0 0.0
    %1340 = vmatprep.subr.mxu0 0.0
    %1341 = vmatpush1.msra.mxu0 0.0
    %1342 = vmatprep.subr.mxu0 0.0
    %1343 = vmatpush1.msra.mxu0 0.0
    %1344 = vmatprep.subr.mxu0 0.0
    %1345 = vmatpush1.msra.mxu0 0.0
    %1346 = vmatprep.subr.mxu0 0.0
    %1347 = vmatpush1.msra.mxu0 0.0
    %1348 = vmatprep.subr.mxu0 0.0
    %1349 = vmatpush1.msra.mxu0 0.0
    %1350 = vmatprep.subr.mxu0 0.0
    %1351 = vmatpush1.msra.mxu0 0.0
    %1352 = vmatprep.subr.mxu0 0.0
    %1353 = vmatpush1.msra.mxu0 0.0
    %1354 = vmatprep.subr.mxu0 0.0
    %1355 = vmatpush1.msra.mxu0 0.0
    %1356 = vmatprep.subr.mxu0 0.0
    %1357 = vmatpush1.msra.mxu0 0.0
    %1358 = vmatprep.subr.mxu0 0.0
    %1359 = vmatpush1.msra.mxu0 0.0
    %1360 = vmatprep.subr.mxu0 0.0
    %1361 = vmatpush1.msra.mxu0 0.0
    %1362 = vmatprep.subr.mxu0 0.0
    %1363 = vmatpush1.msra.mxu0 0.0
    %1364 = vmatprep.subr.mxu0 0.0
    %1365 = vmatpush1.msra.mxu0 0.0
    %1366 = vmatprep.subr.mxu0 0.0
    %1367 = vmatpush1.msra.mxu0 0.0
    %1368 = vmatprep.subr.mxu0 0.0
    %1369 = vmatpush1.msra.mxu0 0.0
    %1370 = vmatprep.subr.mxu0 0.0
    %1371 = vmatpush1.msra.mxu0 0.0
    %1372 = vmatprep.subr.mxu0 0.0
    %1373 = vmatpush1.msra.mxu0 0.0
    %1374 = vmatprep.subr.mxu0 0.0
    %1375 = vmatpush1.msra.mxu0 0.0
    %1376 = vmatprep.subr.mxu0 0.0
    %1377 = vmatpush1.msra.mxu0 0.0
    %1378 = vmatprep.subr.mxu0 0.0
    %1379 = vmatpush1.msra.mxu0 0.0
    %1380 = vmatprep.subr.mxu0 0.0
    %1381 = vmatpush1.msra.mxu0 0.0
    %1382 = vmatprep.subr.mxu0 0.0
    %1383 = vmatpush1.msra.mxu0 0.0
    %1384 = vmatprep.subr.mxu0 0.0
    %1385 = vmatpush1.msra.mxu0 0.0
    %1386 = vmatprep.subr.mxu0 0.0
    %1387 = vmatpush1.msra.mxu0 0.0
    %1388 = vmatprep.subr.mxu0 0.0
    %1389 = vmatpush1.msra.mxu0 0.0
    %1390 = vmatprep.subr.mxu0 0.0
    %1391 = vmatpush1.msra.mxu0 0.0
    %1392 = vmatprep.subr.mxu0 0.0
    %1393 = vmatpush1.msra.mxu0 0.0
    %1394 = vmatprep.mubr.f32.mxu0 0.0
    %1395 = vmatmul.mubr.f32.gmra.mrb[0].mxu0 %v1328
    %v1396 = vpop.f32.mrb[0].mxu0
    %v1397 = vadd.f32 %v1225, %v1396
    %v1398 = vpop.f32.mrb[0].mxu0
    %1399 = vdwg.mxu0
    %v1400 = vld [vmem:[#allocation3 + $0x8] sm:$0xff]
    %v1401 = vadd.f32 %v1400, %v1397
    %v1402 = vmul.f32 %v1401, 0.5
    %v1403 = vtanh.pop %v1402
    %v1404 = vadd.f32 %v1403, 1.0
    %v1405 = vmul.f32 %v1404, 0.5
    %1407 = vrot.lane.b32.xlu0 %v1397, 64
    %v1408 = vpop.permute.xlu0 %1407
    %v1410 = vmul.f32 %v1405, %v1408
    %1412 = vrot.lane.b32.xlu0 %v1410, 64
    %v1413 = vpop.permute.xlu0 %1412
    %v1415 = vadd.f32 %v1400, %v1413
    %v1416 = vtanh.pop %v1415
    %v1417 = vsub.f32 %v1324, %v1416
    %1419 = vrot.lane.b32.xlu0 %v1417, 96
    %v1420 = vpop.permute.xlu0 %1419
    %v1422 = vmul.f32 %v1405, %v1420
    %1424 = vrot.lane.b32.xlu0 %v1422, 32
    %v1425 = vpop.permute.xlu0 %1424
    %v1427 = vadd.f32 %v1416, %v1425
    %1429 = vrot.lane.b32.xlu0 %v1427, 64
    %v1430 = vpop.permute.xlu0 %1429
    %v1431 = vsel %vm218, %v1430, 0
    %1433 = vmatprep.subr.mxu0 0.0
    %1434 = vmatpush1.msra.mxu0 %v1216
    %1435 = vmatprep.subr.mxu0 0.0
    %1436 = vmatpush1.msra.mxu0 %v1217
    %1437 = vmatprep.subr.mxu0 0.0
    %1438 = vmatpush1.msra.mxu0 %v1218
    %1439 = vmatprep.subr.mxu0 0.0
    %1440 = vmatpush1.msra.mxu0 %v1219
    %1441 = vmatprep.subr.mxu0 0.0
    %1442 = vmatpush1.msra.mxu0 0.0
    %1443 = vmatprep.subr.mxu0 0.0
    %1444 = vmatpush1.msra.mxu0 0.0
    %1445 = vmatprep.subr.mxu0 0.0
    %1446 = vmatpush1.msra.mxu0 0.0
    %1447 = vmatprep.subr.mxu0 0.0
    %1448 = vmatpush1.msra.mxu0 0.0
    %1449 = vmatprep.subr.mxu0 0.0
    %1450 = vmatpush1.msra.mxu0 0.0
    %1451 = vmatprep.subr.mxu0 0.0
    %1452 = vmatpush1.msra.mxu0 0.0
    %1453 = vmatprep.subr.mxu0 0.0
    %1454 = vmatpush1.msra.mxu0 0.0
    %1455 = vmatprep.subr.mxu0 0.0
    %1456 = vmatpush1.msra.mxu0 0.0
    %1457 = vmatprep.subr.mxu0 0.0
    %1458 = vmatpush1.msra.mxu0 0.0
    %1459 = vmatprep.subr.mxu0 0.0
    %1460 = vmatpush1.msra.mxu0 0.0
    %1461 = vmatprep.subr.mxu0 0.0
    %1462 = vmatpush1.msra.mxu0 0.0
    %1463 = vmatprep.subr.mxu0 0.0
    %1464 = vmatpush1.msra.mxu0 0.0
    %1465 = vmatprep.subr.mxu0 0.0
    %1466 = vmatpush1.msra.mxu0 0.0
    %1467 = vmatprep.subr.mxu0 0.0
    %1468 = vmatpush1.msra.mxu0 0.0
    %1469 = vmatprep.subr.mxu0 0.0
    %1470 = vmatpush1.msra.mxu0 0.0
    %1471 = vmatprep.subr.mxu0 0.0
    %1472 = vmatpush1.msra.mxu0 0.0
    %1473 = vmatprep.subr.mxu0 0.0
    %1474 = vmatpush1.msra.mxu0 0.0
    %1475 = vmatprep.subr.mxu0 0.0
    %1476 = vmatpush1.msra.mxu0 0.0
    %1477 = vmatprep.subr.mxu0 0.0
    %1478 = vmatpush1.msra.mxu0 0.0
    %1479 = vmatprep.subr.mxu0 0.0
    %1480 = vmatpush1.msra.mxu0 0.0
    %1481 = vmatprep.subr.mxu0 0.0
    %1482 = vmatpush1.msra.mxu0 0.0
    %1483 = vmatprep.subr.mxu0 0.0
    %1484 = vmatpush1.msra.mxu0 0.0
    %1485 = vmatprep.subr.mxu0 0.0
    %1486 = vmatpush1.msra.mxu0 0.0
    %1487 = vmatprep.subr.mxu0 0.0
    %1488 = vmatpush1.msra.mxu0 0.0
    %1489 = vmatprep.subr.mxu0 0.0
    %1490 = vmatpush1.msra.mxu0 0.0
    %1491 = vmatprep.subr.mxu0 0.0
    %1492 = vmatpush1.msra.mxu0 0.0
    %1493 = vmatprep.subr.mxu0 0.0
    %1494 = vmatpush1.msra.mxu0 0.0
    %1495 = vmatprep.subr.mxu0 0.0
    %1496 = vmatpush1.msra.mxu0 0.0
    %1497 = vmatprep.mubr.f32.mxu0 0.0
    %1498 = vmatmul.mubr.f32.gmra.mrb[0].mxu0 %v1431
    %v1499 = vpop.f32.mrb[0].mxu0
    %v1500 = vadd.f32 %v1225, %v1499
    %v1501 = vpop.f32.mrb[0].mxu0
    %1502 = vdwg.mxu0
    %v1503 = vld [vmem:[#allocation3 + $0x10] sm:$0xff]
    %v1504 = vadd.f32 %v1503, %v1500
    %v1505 = vmul.f32 %v1504, 0.5
    %v1506 = vtanh.pop %v1505
    %v1507 = vadd.f32 %v1506, 1.0
    %v1508 = vmul.f32 %v1507, 0.5
    %1510 = vrot.lane.b32.xlu0 %v1500, 64
    %v1511 = vpop.permute.xlu0 %1510
    %v1513 = vmul.f32 %v1508, %v1511
    %1515 = vrot.lane.b32.xlu0 %v1513, 64
    %v1516 = vpop.permute.xlu0 %1515
    %v1518 = vadd.f32 %v1503, %v1516
    %v1519 = vtanh.pop %v1518
    %v1520 = vsub.f32 %v1427, %v1519
    %1522 = vrot.lane.b32.xlu0 %v1520, 96
    %v1523 = vpop.permute.xlu0 %1522
    %v1525 = vmul.f32 %v1508, %v1523
    %1527 = vrot.lane.b32.xlu0 %v1525, 32
    %v1528 = vpop.permute.xlu0 %1527
    %v1530 = vadd.f32 %v1519, %v1528
    %1532 = vrot.lane.b32.xlu0 %v1530, 64
    %v1533 = vpop.permute.xlu0 %1532
    %v1534 = vsel %vm218, %v1533, 0
    %1536 = vmatprep.subr.mxu0 0.0
    %1537 = vmatpush1.msra.mxu0 %v1216
    %1538 = vmatprep.subr.mxu0 0.0
    %1539 = vmatpush1.msra.mxu0 %v1217
    %1540 = vmatprep.subr.mxu0 0.0
    %1541 = vmatpush1.msra.mxu0 %v1218
    %1542 = vmatprep.subr.mxu0 0.0
    %1543 = vmatpush1.msra.mxu0 %v1219
    %1544 = vmatprep.subr.mxu0 0.0
    %1545 = vmatpush1.msra.mxu0 0.0
    %1546 = vmatprep.subr.mxu0 0.0
    %1547 = vmatpush1.msra.mxu0 0.0
    %1548 = vmatprep.subr.mxu0 0.0
    %1549 = vmatpush1.msra.mxu0 0.0
    %1550 = vmatprep.subr.mxu0 0.0
    %1551 = vmatpush1.msra.mxu0 0.0
    %1552 = vmatprep.subr.mxu0 0.0
    %1553 = vmatpush1.msra.mxu0 0.0
    %1554 = vmatprep.subr.mxu0 0.0
    %1555 = vmatpush1.msra.mxu0 0.0
    %1556 = vmatprep.subr.mxu0 0.0
    %1557 = vmatpush1.msra.mxu0 0.0
    %1558 = vmatprep.subr.mxu0 0.0
    %1559 = vmatpush1.msra.mxu0 0.0
    %1560 = vmatprep.subr.mxu0 0.0
    %1561 = vmatpush1.msra.mxu0 0.0
    %1562 = vmatprep.subr.mxu0 0.0
    %1563 = vmatpush1.msra.mxu0 0.0
    %1564 = vmatprep.subr.mxu0 0.0
    %1565 = vmatpush1.msra.mxu0 0.0
    %1566 = vmatprep.subr.mxu0 0.0
    %1567 = vmatpush1.msra.mxu0 0.0
    %1568 = vmatprep.subr.mxu0 0.0
    %1569 = vmatpush1.msra.mxu0 0.0
    %1570 = vmatprep.subr.mxu0 0.0
    %1571 = vmatpush1.msra.mxu0 0.0
    %1572 = vmatprep.subr.mxu0 0.0
    %1573 = vmatpush1.msra.mxu0 0.0
    %1574 = vmatprep.subr.mxu0 0.0
    %1575 = vmatpush1.msra.mxu0 0.0
    %1576 = vmatprep.subr.mxu0 0.0
    %1577 = vmatpush1.msra.mxu0 0.0
    %1578 = vmatprep.subr.mxu0 0.0
    %1579 = vmatpush1.msra.mxu0 0.0
    %1580 = vmatprep.subr.mxu0 0.0
    %1581 = vmatpush1.msra.mxu0 0.0
    %1582 = vmatprep.subr.mxu0 0.0
    %1583 = vmatpush1.msra.mxu0 0.0
    %1584 = vmatprep.subr.mxu0 0.0
    %1585 = vmatpush1.msra.mxu0 0.0
    %1586 = vmatprep.subr.mxu0 0.0
    %1587 = vmatpush1.msra.mxu0 0.0
    %1588 = vmatprep.subr.mxu0 0.0
    %1589 = vmatpush1.msra.mxu0 0.0
    %1590 = vmatprep.subr.mxu0 0.0
    %1591 = vmatpush1.msra.mxu0 0.0
    %1592 = vmatprep.subr.mxu0 0.0
    %1593 = vmatpush1.msra.mxu0 0.0
    %1594 = vmatprep.subr.mxu0 0.0
    %1595 = vmatpush1.msra.mxu0 0.0
    %1596 = vmatprep.subr.mxu0 0.0
    %1597 = vmatpush1.msra.mxu0 0.0
    %1598 = vmatprep.subr.mxu0 0.0
    %1599 = vmatpush1.msra.mxu0 0.0
    %1600 = vmatprep.mubr.f32.mxu0 0.0
    %1601 = vmatmul.mubr.f32.gmra.mrb[0].mxu0 %v1534
    %v1602 = vpop.f32.mrb[0].mxu0
    %v1603 = vadd.f32 %v1225, %v1602
    %v1604 = vpop.f32.mrb[0].mxu0
    %1605 = vdwg.mxu0
    %v1606 = vld [vmem:[#allocation3 + $0x18] sm:$0xff]
    %v1607 = vadd.f32 %v1606, %v1603
    %v1608 = vmul.f32 %v1607, 0.5
    %v1609 = vtanh.pop %v1608
    %v1610 = vadd.f32 %v1609, 1.0
    %v1611 = vmul.f32 %v1610, 0.5
    %1613 = vrot.lane.b32.xlu0 %v1603, 64
    %v1614 = vpop.permute.xlu0 %1613
    %v1616 = vmul.f32 %v1611, %v1614
    %1618 = vrot.lane.b32.xlu0 %v1616, 64
    %v1619 = vpop.permute.xlu0 %1618
    %v1621 = vadd.f32 %v1606, %v1619
    %v1622 = vtanh.pop %v1621
    %v1623 = vsub.f32 %v1530, %v1622
    %1625 = vrot.lane.b32.xlu0 %v1623, 96
    %v1626 = vpop.permute.xlu0 %1625
    %v1628 = vmul.f32 %v1611, %v1626
    %1630 = vrot.lane.b32.xlu0 %v1628, 32
    %v1631 = vpop.permute.xlu0 %1630
    %v1633 = vadd.f32 %v1622, %v1631
    %1635 = vrot.lane.b32.xlu0 %v1633, 64
    %v1636 = vpop.permute.xlu0 %1635
    %v1637 = vsel %vm218, %v1636, 0
    %1639 = vmatprep.subr.mxu0 0.0
    %1640 = vmatpush1.msra.mxu0 %v1216
    %1641 = vmatprep.subr.mxu0 0.0
    %1642 = vmatpush1.msra.mxu0 %v1217
    %1643 = vmatprep.subr.mxu0 0.0
    %1644 = vmatpush1.msra.mxu0 %v1218
    %1645 = vmatprep.subr.mxu0 0.0
    %1646 = vmatpush1.msra.mxu0 %v1219
    %1647 = vmatprep.subr.mxu0 0.0
    %1648 = vmatpush1.msra.mxu0 0.0
    %1649 = vmatprep.subr.mxu0 0.0
    %1650 = vmatpush1.msra.mxu0 0.0
    %1651 = vmatprep.subr.mxu0 0.0
    %1652 = vmatpush1.msra.mxu0 0.0
    %1653 = vmatprep.subr.mxu0 0.0
    %1654 = vmatpush1.msra.mxu0 0.0
    %1655 = vmatprep.subr.mxu0 0.0
    %1656 = vmatpush1.msra.mxu0 0.0
    %1657 = vmatprep.subr.mxu0 0.0
    %1658 = vmatpush1.msra.mxu0 0.0
    %1659 = vmatprep.subr.mxu0 0.0
    %1660 = vmatpush1.msra.mxu0 0.0
    %1661 = vmatprep.subr.mxu0 0.0
    %1662 = vmatpush1.msra.mxu0 0.0
    %1663 = vmatprep.subr.mxu0 0.0
    %1664 = vmatpush1.msra.mxu0 0.0
    %1665 = vmatprep.subr.mxu0 0.0
    %1666 = vmatpush1.msra.mxu0 0.0
    %1667 = vmatprep.subr.mxu0 0.0
    %1668 = vmatpush1.msra.mxu0 0.0
    %1669 = vmatprep.subr.mxu0 0.0
    %1670 = vmatpush1.msra.mxu0 0.0
    %1671 = vmatprep.subr.mxu0 0.0
    %1672 = vmatpush1.msra.mxu0 0.0
    %1673 = vmatprep.subr.mxu0 0.0
    %1674 = vmatpush1.msra.mxu0 0.0
    %1675 = vmatprep.subr.mxu0 0.0
    %1676 = vmatpush1.msra.mxu0 0.0
    %1677 = vmatprep.subr.mxu0 0.0
    %1678 = vmatpush1.msra.mxu0 0.0
    %1679 = vmatprep.subr.mxu0 0.0
    %1680 = vmatpush1.msra.mxu0 0.0
    %1681 = vmatprep.subr.mxu0 0.0
    %1682 = vmatpush1.msra.mxu0 0.0
    %1683 = vmatprep.subr.mxu0 0.0
    %1684 = vmatpush1.msra.mxu0 0.0
    %1685 = vmatprep.subr.mxu0 0.0
    %1686 = vmatpush1.msra.mxu0 0.0
    %1687 = vmatprep.subr.mxu0 0.0
    %1688 = vmatpush1.msra.mxu0 0.0
    %1689 = vmatprep.subr.mxu0 0.0
    %1690 = vmatpush1.msra.mxu0 0.0
    %1691 = vmatprep.subr.mxu0 0.0
    %1692 = vmatpush1.msra.mxu0 0.0
    %1693 = vmatprep.subr.mxu0 0.0
    %1694 = vmatpush1.msra.mxu0 0.0
    %1695 = vmatprep.subr.mxu0 0.0
    %1696 = vmatpush1.msra.mxu0 0.0
    %1697 = vmatprep.subr.mxu0 0.0
    %1698 = vmatpush1.msra.mxu0 0.0
    %1699 = vmatprep.subr.mxu0 0.0
    %1700 = vmatpush1.msra.mxu0 0.0
    %1701 = vmatprep.subr.mxu0 0.0
    %1702 = vmatpush1.msra.mxu0 0.0
    %1703 = vmatprep.mubr.f32.mxu0 0.0
    %1704 = vmatmul.mubr.f32.gmra.mrb[0].mxu0 %v1637
    %v1705 = vpop.f32.mrb[0].mxu0
    %v1706 = vadd.f32 %v1225, %v1705
    %v1707 = vpop.f32.mrb[0].mxu0
    %1708 = vdwg.mxu0
    %v1709 = vld [vmem:[#allocation3 + $0x20] sm:$0xff]
    %v1710 = vadd.f32 %v1709, %v1706
    %v1711 = vmul.f32 %v1710, 0.5
    %v1712 = vtanh.pop %v1711
    %v1713 = vadd.f32 %v1712, 1.0
    %v1714 = vmul.f32 %v1713, 0.5
    %1716 = vrot.lane.b32.xlu0 %v1706, 64
    %v1717 = vpop.permute.xlu0 %1716
    %v1719 = vmul.f32 %v1714, %v1717
    %1721 = vrot.lane.b32.xlu0 %v1719, 64
    %v1722 = vpop.permute.xlu0 %1721
    %v1724 = vadd.f32 %v1709, %v1722
    %v1725 = vtanh.pop %v1724
    %v1726 = vsub.f32 %v1633, %v1725
    %1728 = vrot.lane.b32.xlu0 %v1726, 96
    %v1729 = vpop.permute.xlu0 %1728
    %v1731 = vmul.f32 %v1714, %v1729
    %1733 = vrot.lane.b32.xlu0 %v1731, 32
    %v1734 = vpop.permute.xlu0 %1733
    %v1736 = vadd.f32 %v1725, %v1734
    %1738 = vrot.lane.b32.xlu0 %v1736, 64
    %v1739 = vpop.permute.xlu0 %1738
    %v1740 = vsel %vm218, %v1739, 0
    %1742 = vmatprep.subr.mxu0 0.0
    %1743 = vmatpush1.msra.mxu0 %v1216
    %1744 = vmatprep.subr.mxu0 0.0
    %1745 = vmatpush1.msra.mxu0 %v1217
    %1746 = vmatprep.subr.mxu0 0.0
    %1747 = vmatpush1.msra.mxu0 %v1218
    %1748 = vmatprep.subr.mxu0 0.0
    %1749 = vmatpush1.msra.mxu0 %v1219
    %1750 = vmatprep.subr.mxu0 0.0
    %1751 = vmatpush1.msra.mxu0 0.0
    %1752 = vmatprep.subr.mxu0 0.0
    %1753 = vmatpush1.msra.mxu0 0.0
    %1754 = vmatprep.subr.mxu0 0.0
    %1755 = vmatpush1.msra.mxu0 0.0
    %1756 = vmatprep.subr.mxu0 0.0
    %1757 = vmatpush1.msra.mxu0 0.0
    %1758 = vmatprep.subr.mxu0 0.0
    %1759 = vmatpush1.msra.mxu0 0.0
    %1760 = vmatprep.subr.mxu0 0.0
    %1761 = vmatpush1.msra.mxu0 0.0
    %1762 = vmatprep.subr.mxu0 0.0
    %1763 = vmatpush1.msra.mxu0 0.0
    %1764 = vmatprep.subr.mxu0 0.0
    %1765 = vmatpush1.msra.mxu0 0.0
    %1766 = vmatprep.subr.mxu0 0.0
    %1767 = vmatpush1.msra.mxu0 0.0
    %1768 = vmatprep.subr.mxu0 0.0
    %1769 = vmatpush1.msra.mxu0 0.0
    %1770 = vmatprep.subr.mxu0 0.0
    %1771 = vmatpush1.msra.mxu0 0.0
    %1772 = vmatprep.subr.mxu0 0.0
    %1773 = vmatpush1.msra.mxu0 0.0
    %1774 = vmatprep.subr.mxu0 0.0
    %1775 = vmatpush1.msra.mxu0 0.0
    %1776 = vmatprep.subr.mxu0 0.0
    %1777 = vmatpush1.msra.mxu0 0.0
    %1778 = vmatprep.subr.mxu0 0.0
    %1779 = vmatpush1.msra.mxu0 0.0
    %1780 = vmatprep.subr.mxu0 0.0
    %1781 = vmatpush1.msra.mxu0 0.0
    %1782 = vmatprep.subr.mxu0 0.0
    %1783 = vmatpush1.msra.mxu0 0.0
    %1784 = vmatprep.subr.mxu0 0.0
    %1785 = vmatpush1.msra.mxu0 0.0
    %1786 = vmatprep.subr.mxu0 0.0
    %1787 = vmatpush1.msra.mxu0 0.0
    %1788 = vmatprep.subr.mxu0 0.0
    %1789 = vmatpush1.msra.mxu0 0.0
    %1790 = vmatprep.subr.mxu0 0.0
    %1791 = vmatpush1.msra.mxu0 0.0
    %1792 = vmatprep.subr.mxu0 0.0
    %1793 = vmatpush1.msra.mxu0 0.0
    %1794 = vmatprep.subr.mxu0 0.0
    %1795 = vmatpush1.msra.mxu0 0.0
    %1796 = vmatprep.subr.mxu0 0.0
    %1797 = vmatpush1.msra.mxu0 0.0
    %1798 = vmatprep.subr.mxu0 0.0
    %1799 = vmatpush1.msra.mxu0 0.0
    %1800 = vmatprep.subr.mxu0 0.0
    %1801 = vmatpush1.msra.mxu0 0.0
    %1802 = vmatprep.subr.mxu0 0.0
    %1803 = vmatpush1.msra.mxu0 0.0
    %1804 = vmatprep.subr.mxu0 0.0
    %1805 = vmatpush1.msra.mxu0 0.0
    %1806 = vmatprep.mubr.f32.mxu0 0.0
    %1807 = vmatmul.mubr.f32.gmra.mrb[0].mxu0 %v1740
    %v1808 = vpop.f32.mrb[0].mxu0
    %v1809 = vadd.f32 %v1225, %v1808
    %v1810 = vpop.f32.mrb[0].mxu0
    %1811 = vdwg.mxu0
    %v1812 = vld [vmem:[#allocation3 + $0x28] sm:$0xff]
    %v1813 = vadd.f32 %v1812, %v1809
    %v1814 = vmul.f32 %v1813, 0.5
    %v1815 = vtanh.pop %v1814
    %v1816 = vadd.f32 %v1815, 1.0
    %v1817 = vmul.f32 %v1816, 0.5
    %1819 = vrot.lane.b32.xlu0 %v1809, 64
    %v1820 = vpop.permute.xlu0 %1819
    %v1822 = vmul.f32 %v1817, %v1820
    %1824 = vrot.lane.b32.xlu0 %v1822, 64
    %v1825 = vpop.permute.xlu0 %1824
    %v1827 = vadd.f32 %v1812, %v1825
    %v1828 = vtanh.pop %v1827
    %v1829 = vsub.f32 %v1736, %v1828
    %1831 = vrot.lane.b32.xlu0 %v1829, 96
    %v1832 = vpop.permute.xlu0 %1831
    %v1834 = vmul.f32 %v1817, %v1832
    %1836 = vrot.lane.b32.xlu0 %v1834, 32
    %v1837 = vpop.permute.xlu0 %1836
    %v1839 = vadd.f32 %v1828, %v1837
    %1841 = vrot.lane.b32.xlu0 %v1839, 64
    %v1842 = vpop.permute.xlu0 %1841
    %v1843 = vsel %vm218, %v1842, 0
    %1845 = vmatprep.subr.mxu0 0.0
    %1846 = vmatpush1.msra.mxu0 %v1216
    %1847 = vmatprep.subr.mxu0 0.0
    %1848 = vmatpush1.msra.mxu0 %v1217
    %1849 = vmatprep.subr.mxu0 0.0
    %1850 = vmatpush1.msra.mxu0 %v1218
    %1851 = vmatprep.subr.mxu0 0.0
    %1852 = vmatpush1.msra.mxu0 %v1219
    %1853 = vmatprep.subr.mxu0 0.0
    %1854 = vmatpush1.msra.mxu0 0.0
    %1855 = vmatprep.subr.mxu0 0.0
    %1856 = vmatpush1.msra.mxu0 0.0
    %1857 = vmatprep.subr.mxu0 0.0
    %1858 = vmatpush1.msra.mxu0 0.0
    %1859 = vmatprep.subr.mxu0 0.0
    %1860 = vmatpush1.msra.mxu0 0.0
    %1861 = vmatprep.subr.mxu0 0.0
    %1862 = vmatpush1.msra.mxu0 0.0
    %1863 = vmatprep.subr.mxu0 0.0
    %1864 = vmatpush1.msra.mxu0 0.0
    %1865 = vmatprep.subr.mxu0 0.0
    %1866 = vmatpush1.msra.mxu0 0.0
    %1867 = vmatprep.subr.mxu0 0.0
    %1868 = vmatpush1.msra.mxu0 0.0
    %1869 = vmatprep.subr.mxu0 0.0
    %1870 = vmatpush1.msra.mxu0 0.0
    %1871 = vmatprep.subr.mxu0 0.0
    %1872 = vmatpush1.msra.mxu0 0.0
    %1873 = vmatprep.subr.mxu0 0.0
    %1874 = vmatpush1.msra.mxu0 0.0
    %1875 = vmatprep.subr.mxu0 0.0
    %1876 = vmatpush1.msra.mxu0 0.0
    %1877 = vmatprep.subr.mxu0 0.0
    %1878 = vmatpush1.msra.mxu0 0.0
    %1879 = vmatprep.subr.mxu0 0.0
    %1880 = vmatpush1.msra.mxu0 0.0
    %1881 = vmatprep.subr.mxu0 0.0
    %1882 = vmatpush1.msra.mxu0 0.0
    %1883 = vmatprep.subr.mxu0 0.0
    %1884 = vmatpush1.msra.mxu0 0.0
    %1885 = vmatprep.subr.mxu0 0.0
    %1886 = vmatpush1.msra.mxu0 0.0
    %1887 = vmatprep.subr.mxu0 0.0
    %1888 = vmatpush1.msra.mxu0 0.0
    %1889 = vmatprep.subr.mxu0 0.0
    %1890 = vmatpush1.msra.mxu0 0.0
    %1891 = vmatprep.subr.mxu0 0.0
    %1892 = vmatpush1.msra.mxu0 0.0
    %1893 = vmatprep.subr.mxu0 0.0
    %1894 = vmatpush1.msra.mxu0 0.0
    %1895 = vmatprep.subr.mxu0 0.0
    %1896 = vmatpush1.msra.mxu0 0.0
    %1897 = vmatprep.subr.mxu0 0.0
    %1898 = vmatpush1.msra.mxu0 0.0
    %1899 = vmatprep.subr.mxu0 0.0
    %1900 = vmatpush1.msra.mxu0 0.0
    %1901 = vmatprep.subr.mxu0 0.0
    %1902 = vmatpush1.msra.mxu0 0.0
    %1903 = vmatprep.subr.mxu0 0.0
    %1904 = vmatpush1.msra.mxu0 0.0
    %1905 = vmatprep.subr.mxu0 0.0
    %1906 = vmatpush1.msra.mxu0 0.0
    %1907 = vmatprep.subr.mxu0 0.0
    %1908 = vmatpush1.msra.mxu0 0.0
    %1909 = vmatprep.mubr.f32.mxu0 0.0
    %1910 = vmatmul.mubr.f32.gmra.mrb[0].mxu0 %v1843
    %v1911 = vpop.f32.mrb[0].mxu0
    %v1912 = vadd.f32 %v1225, %v1911
    %v1913 = vpop.f32.mrb[0].mxu0
    %1914 = vdwg.mxu0
    %v1915 = vld [vmem:[#allocation3 + $0x30] sm:$0xff]
    %v1916 = vadd.f32 %v1915, %v1912
    %v1917 = vmul.f32 %v1916, 0.5
    %v1918 = vtanh.pop %v1917
    %v1919 = vadd.f32 %v1918, 1.0
    %v1920 = vmul.f32 %v1919, 0.5
    %1922 = vrot.lane.b32.xlu0 %v1912, 64
    %v1923 = vpop.permute.xlu0 %1922
    %v1925 = vmul.f32 %v1920, %v1923
    %1927 = vrot.lane.b32.xlu0 %v1925, 64
    %v1928 = vpop.permute.xlu0 %1927
    %v1930 = vadd.f32 %v1915, %v1928
    %v1931 = vtanh.pop %v1930
    %v1932 = vsub.f32 %v1839, %v1931
    %1934 = vrot.lane.b32.xlu0 %v1932, 96
    %v1935 = vpop.permute.xlu0 %1934
    %v1937 = vmul.f32 %v1920, %v1935
    %1939 = vrot.lane.b32.xlu0 %v1937, 32
    %v1940 = vpop.permute.xlu0 %1939
    %v1942 = vadd.f32 %v1931, %v1940
    %1944 = vrot.lane.b32.xlu0 %v1942, 64
    %v1945 = vpop.permute.xlu0 %1944
    %v1946 = vsel %vm218, %v1945, 0
    %1948 = vmatprep.subr.mxu0 0.0
    %1949 = vmatpush1.msra.mxu0 %v1216
    %1950 = vmatprep.subr.mxu0 0.0
    %1951 = vmatpush1.msra.mxu0 %v1217
    %1952 = vmatprep.subr.mxu0 0.0
    %1953 = vmatpush1.msra.mxu0 %v1218
    %1954 = vmatprep.subr.mxu0 0.0
    %1955 = vmatpush1.msra.mxu0 %v1219
    %1956 = vmatprep.subr.mxu0 0.0
    %1957 = vmatpush1.msra.mxu0 0.0
    %1958 = vmatprep.subr.mxu0 0.0
    %1959 = vmatpush1.msra.mxu0 0.0
    %1960 = vmatprep.subr.mxu0 0.0
    %1961 = vmatpush1.msra.mxu0 0.0
    %1962 = vmatprep.subr.mxu0 0.0
    %1963 = vmatpush1.msra.mxu0 0.0
    %1964 = vmatprep.subr.mxu0 0.0
    %1965 = vmatpush1.msra.mxu0 0.0
    %1966 = vmatprep.subr.mxu0 0.0
    %1967 = vmatpush1.msra.mxu0 0.0
    %1968 = vmatprep.subr.mxu0 0.0
    %1969 = vmatpush1.msra.mxu0 0.0
    %1970 = vmatprep.subr.mxu0 0.0
    %1971 = vmatpush1.msra.mxu0 0.0
    %1972 = vmatprep.subr.mxu0 0.0
    %1973 = vmatpush1.msra.mxu0 0.0
    %1974 = vmatprep.subr.mxu0 0.0
    %1975 = vmatpush1.msra.mxu0 0.0
    %1976 = vmatprep.subr.mxu0 0.0
    %1977 = vmatpush1.msra.mxu0 0.0
    %1978 = vmatprep.subr.mxu0 0.0
    %1979 = vmatpush1.msra.mxu0 0.0
    %1980 = vmatprep.subr.mxu0 0.0
    %1981 = vmatpush1.msra.mxu0 0.0
    %1982 = vmatprep.subr.mxu0 0.0
    %1983 = vmatpush1.msra.mxu0 0.0
    %1984 = vmatprep.subr.mxu0 0.0
    %1985 = vmatpush1.msra.mxu0 0.0
    %1986 = vmatprep.subr.mxu0 0.0
    %1987 = vmatpush1.msra.mxu0 0.0
    %1988 = vmatprep.subr.mxu0 0.0
    %1989 = vmatpush1.msra.mxu0 0.0
    %1990 = vmatprep.subr.mxu0 0.0
    %1991 = vmatpush1.msra.mxu0 0.0
    %1992 = vmatprep.subr.mxu0 0.0
    %1993 = vmatpush1.msra.mxu0 0.0
    %1994 = vmatprep.subr.mxu0 0.0
    %1995 = vmatpush1.msra.mxu0 0.0
    %1996 = vmatprep.subr.mxu0 0.0
    %1997 = vmatpush1.msra.mxu0 0.0
    %1998 = vmatprep.subr.mxu0 0.0
    %1999 = vmatpush1.msra.mxu0 0.0
    %2000 = vmatprep.subr.mxu0 0.0
    %2001 = vmatpush1.msra.mxu0 0.0
    %2002 = vmatprep.subr.mxu0 0.0
    %2003 = vmatpush1.msra.mxu0 0.0
    %2004 = vmatprep.subr.mxu0 0.0
    %2005 = vmatpush1.msra.mxu0 0.0
    %2006 = vmatprep.subr.mxu0 0.0
    %2007 = vmatpush1.msra.mxu0 0.0
    %2008 = vmatprep.subr.mxu0 0.0
    %2009 = vmatpush1.msra.mxu0 0.0
    %2010 = vmatprep.subr.mxu0 0.0
    %2011 = vmatpush1.msra.mxu0 0.0
    %2012 = vmatprep.mubr.f32.mxu0 0.0
    %2013 = vmatmul.mubr.f32.gmra.mrb[0].mxu0 %v1946
    %v2014 = vpop.f32.mrb[0].mxu0
    %v2015 = vadd.f32 %v1225, %v2014
    %v2016 = vpop.f32.mrb[0].mxu0
    %2017 = vdwg.mxu0
    %v2018 = vld [vmem:[#allocation3 + $0x38] sm:$0xff]
    %v2019 = vadd.f32 %v2018, %v2015
    %v2020 = vmul.f32 %v2019, 0.5
    %v2021 = vtanh.pop %v2020
    %v2022 = vadd.f32 %v2021, 1.0
    %v2023 = vmul.f32 %v2022, 0.5
    %2025 = vrot.lane.b32.xlu0 %v2015, 64
    %v2026 = vpop.permute.xlu0 %2025
    %v2028 = vmul.f32 %v2023, %v2026
    %2030 = vrot.lane.b32.xlu0 %v2028, 64
    %v2031 = vpop.permute.xlu0 %2030
    %v2033 = vadd.f32 %v2018, %v2031
    %v2034 = vtanh.pop %v2033
    %v2035 = vsub.f32 %v1942, %v2034
    %2037 = vrot.lane.b32.xlu0 %v2035, 96
    %v2038 = vpop.permute.xlu0 %2037
    %v2040 = vmul.f32 %v2023, %v2038
    %2042 = vrot.lane.b32.xlu0 %v2040, 32
    %v2043 = vpop.permute.xlu0 %2042
    %v2045 = vadd.f32 %v2034, %v2043
    %v2046 = vld [vmem:[%s9] sm:$0xff]
    %v2047 = vld [vmem:[%s9 + $0x8] sm:$0xff]
    %v2048 = vld [vmem:[%s9 + $0x10] sm:$0xff]
    %v2049 = vld [vmem:[%s9 + $0x18] sm:$0xff]
    %v2050 = vld [vmem:[%s10] sm:$0x1]
    %v2052 = vlaneseq
    %v2053 = vshrl.u32 %v2052, 7
    %v2054 = vsub.s32 0, %v2053
    %v2055 = vrot.slane %v2050, %v2054
    %2058 = vrot.lane.b32.xlu0 %v2045, 64
    %v2059 = vpop.permute.xlu0 %2058
    %v2060 = vsel %vm218, %v2059, 0
    %2062 = vmatprep.subr.mxu0 0.0
    %2063 = vmatpush1.msra.mxu0 %v2046
    %2064 = vmatprep.subr.mxu0 0.0
    %2065 = vmatpush1.msra.mxu0 %v2047
    %2066 = vmatprep.subr.mxu0 0.0
    %2067 = vmatpush1.msra.mxu0 %v2048
    %2068 = vmatprep.subr.mxu0 0.0
    %2069 = vmatpush1.msra.mxu0 %v2049
    %2070 = vmatprep.subr.mxu0 0.0
    %2071 = vmatpush1.msra.mxu0 0.0
    %2072 = vmatprep.subr.mxu0 0.0
    %2073 = vmatpush1.msra.mxu0 0.0
    %2074 = vmatprep.subr.mxu0 0.0
    %2075 = vmatpush1.msra.mxu0 0.0
    %2076 = vmatprep.subr.mxu0 0.0
    %2077 = vmatpush1.msra.mxu0 0.0
    %2078 = vmatprep.subr.mxu0 0.0
    %2079 = vmatpush1.msra.mxu0 0.0
    %2080 = vmatprep.subr.mxu0 0.0
    %2081 = vmatpush1.msra.mxu0 0.0
    %2082 = vmatprep.subr.mxu0 0.0
    %2083 = vmatpush1.msra.mxu0 0.0
    %2084 = vmatprep.subr.mxu0 0.0
    %2085 = vmatpush1.msra.mxu0 0.0
    %2086 = vmatprep.subr.mxu0 0.0
    %2087 = vmatpush1.msra.mxu0 0.0
    %2088 = vmatprep.subr.mxu0 0.0
    %2089 = vmatpush1.msra.mxu0 0.0
    %2090 = vmatprep.subr.mxu0 0.0
    %2091 = vmatpush1.msra.mxu0 0.0
    %2092 = vmatprep.subr.mxu0 0.0
    %2093 = vmatpush1.msra.mxu0 0.0
    %2094 = vmatprep.subr.mxu0 0.0
    %2095 = vmatpush1.msra.mxu0 0.0
    %2096 = vmatprep.subr.mxu0 0.0
    %2097 = vmatpush1.msra.mxu0 0.0
    %2098 = vmatprep.subr.mxu0 0.0
    %2099 = vmatpush1.msra.mxu0 0.0
    %2100 = vmatprep.subr.mxu0 0.0
    %2101 = vmatpush1.msra.mxu0 0.0
    %2102 = vmatprep.subr.mxu0 0.0
    %2103 = vmatpush1.msra.mxu0 0.0
    %2104 = vmatprep.subr.mxu0 0.0
    %2105 = vmatpush1.msra.mxu0 0.0
    %2106 = vmatprep.subr.mxu0 0.0
    %2107 = vmatpush1.msra.mxu0 0.0
    %2108 = vmatprep.subr.mxu0 0.0
    %2109 = vmatpush1.msra.mxu0 0.0
    %2110 = vmatprep.subr.mxu0 0.0
    %2111 = vmatpush1.msra.mxu0 0.0
    %2112 = vmatprep.subr.mxu0 0.0
    %2113 = vmatpush1.msra.mxu0 0.0
    %2114 = vmatprep.subr.mxu0 0.0
    %2115 = vmatpush1.msra.mxu0 0.0
    %2116 = vmatprep.subr.mxu0 0.0
    %2117 = vmatpush1.msra.mxu0 0.0
    %2118 = vmatprep.subr.mxu0 0.0
    %2119 = vmatpush1.msra.mxu0 0.0
    %2120 = vmatprep.subr.mxu0 0.0
    %2121 = vmatpush1.msra.mxu0 0.0
    %2122 = vmatprep.subr.mxu0 0.0
    %2123 = vmatpush1.msra.mxu0 0.0
    %2124 = vmatprep.subr.mxu0 0.0
    %2125 = vmatpush1.msra.mxu0 0.0
    %2126 = vmatprep.mubr.f32.mxu0 0.0
    %2127 = vmatmul.mubr.f32.gmra.mrb[0].mxu0 %v2060
    %v2128 = vpop.f32.mrb[0].mxu0
    %v2129 = vadd.f32 %v2055, %v2128
    %v2130 = vpop.f32.mrb[0].mxu0
    %2131 = vdwg.mxu0
    %2132 = vst [vmem:[%s11] sm:$0xff] %v2129
    // Predicated region
    $region50: #{gru_model_forward.1} parent=1 // pred_check
      _
    $region51: #{gru_model_forward.1} parent=1 // pred_check_branch
      %2134 = sbr.rel (0) target = $region53
    $region52: #{gru_model_forward.1} parent=1 // pred_region
      _
    $region53: #{gru_model_forward.1} parent=1 // pred_fallthru
      _
    // Predicated region
    $region54: #{gru_model_forward.1} parent=1 // pred_check
      _
    $region55: #{gru_model_forward.1} parent=1 // pred_check_branch
      %2136 = sbr.rel (0) target = $region57
    $region56: #{gru_model_forward.1} parent=1 // pred_region
      _
    $region57: #{gru_model_forward.1} parent=1 // pred_fallthru
      _
    %2137 = vsyncpa [#allocation5], 1

</llo_original>
